<compile_context>
chip_gen: v5e
topology: v5e:2x2
jax: 0.10.0
libtpu: 0.0.40
codegen_flags: <defaults>
</compile_context>

<pallas_src>
import functools

import jax
import jax.numpy as jnp
from jax.experimental import pallas as pl
from jax.experimental.pallas import tpu as pltpu

KSIZE = 5
PAD = KSIZE // 2                      # 'same' padding for the 5x5 conv
EPS = 1e-5
MATMUL_DTYPE = jnp.bfloat16           # MXU operand dtype (f32 accumulation)
VMEM_LIMIT = 32 * 1024 * 1024


# ----------------------------- Pallas kernels ------------------------------

def _conv5_stats_kernel(xm_ref, xh_ref, mask_ref, w_ref, b_ref,
                        y_ref, sum_ref, sq_ref, patch_ref, *, width):
    """5x5 'same' conv on one (image, row-tile) + per-tile BN partial sums.

    xm_ref:    (1, C, TH*W)      main rows of the (flat, row-padded) input, f32
    xh_ref:    (1, C, HALO_L)    halo lanes below the tile (first 4*W+2 used)
    mask_ref:  (5, 1, TH*W)      per-dx column-validity masks, bf16 (1.0/0.0)
    w_ref:     (C, 25*C)         conv1 weight, [co, (dy*5+dx)*C + ci], bf16
    b_ref:     (C, 1)            conv1 bias, f32
    y_ref:     (1, C, TH*W)      conv1 output tile (pixels in lanes), bf16
    sum_ref:   (1, 1, C, 1)      per-tile sum over pixels, f32
    sq_ref:    (1, 1, C, 1)      per-tile sum of squares, f32
    patch_ref: (25*C, TH*W)      im2col scratch, bf16 (VMEM)
    """
    C = y_ref.shape[1]
    P = y_ref.shape[2]                            # = TH * width
    W = width

    main = xm_ref[0].astype(MATMUL_DTYPE)                    # (C, P)
    halo = xh_ref[0][:, :4 * W + 2].astype(MATMUL_DTYPE)     # (C, 4W + 2)
    lead = jnp.zeros((C, PAD), MATMUL_DTYPE)                 # left guard lanes
    xt = jnp.concatenate([lead, main, halo], axis=1)         # (C, P + 4W + 4)

    # im2col: patch[(dy*5+dx)*C + ci, r*W + w] = xpad[ci, tile_row r+dy, w+dx-2]
    # Horizontal taps are plain lane-offset slices of the flat slab; columns
    # that would cross a row boundary are zeroed by the precomputed masks.
    for dy in range(KSIZE):
        for dx in range(KSIZE):
            t = dy * KSIZE + dx
            piece = xt[:, dy * W + dx: dy * W + dx + P]       # (C, P)
            if dx != PAD:                                     # edge columns
                piece = piece * mask_ref[dx]                  # (1, P) broadcast
            patch_ref[t * C:(t + 1) * C, :] = piece

    # One MXU matmul with K = 25*C (instead of 25 K=C pushes), f32 accumulate.
    acc = jnp.dot(w_ref[...], patch_ref[...],
                  preferred_element_type=jnp.float32) + b_ref[...]   # (C, P)

    y_ref[...] = acc.astype(MATMUL_DTYPE)[None]

    # Per-(image, tile) partial sums, reduced in the wrapper -> no grid axis
    # needs to be serialized ("arbitrary"); both axes stay "parallel".
    sum_ref[...] = jnp.sum(acc, axis=1, keepdims=True)[None, None]
    sq_ref[...] = jnp.sum(acc * acc, axis=1, keepdims=True)[None, None]


def _bn_mlp_res_kernel(y1_ref, x_ref, scale_ref, shift_ref,
                       w2_ref, b2_ref, w3_ref, b3_ref, o_ref):
    """Fused BN-apply + 1x1 conv + ReLU + 1x1 conv + residual on one tile.

    y1_ref: (1, C, P) bf16   conv1 output tile
    x_ref:  (1, C, P) f32    residual input tile
    scale/shift: (C, 1) f32  folded train-mode BatchNorm
    w2_ref: (4C, C) bf16  b2_ref: (4C, 1) f32
    w3_ref: (C, 4C) bf16  b3_ref: (C, 1) f32
    o_ref:  (1, C, P) f32
    """
    h = y1_ref[0] * scale_ref[...] + shift_ref[...]                    # f32 (C,P)
    h2 = jnp.dot(w2_ref[...], h.astype(MATMUL_DTYPE),
                 preferred_element_type=jnp.float32) + b2_ref[...]     # (4C,P)
    h2 = jnp.maximum(h2, 0.0)
    h3 = jnp.dot(w3_ref[...], h2.astype(MATMUL_DTYPE),
                 preferred_element_type=jnp.float32) + b3_ref[...]     # (C,P)
    o_ref[...] = (h3 + x_ref[0])[None]


# ------------------------------- Wrapper ------------------------------------

def _pick_row_tile(H, W, C, halo_l):
    """Largest row tile TH with H % TH == 0, lane-dense TH*W (mult. of 128),
    halo-compatible (TH*W % halo_l == 0) and a per-grid-step VMEM footprint
    well under the scoped limit (v7x: 64 MiB physical / 32 MiB default)."""
    best = None
    for th in range(1, H + 1):
        if H % th or (th * W) % 128 or (th * W) % halo_l:
            continue
        p = th * W
        est = (2 * C * p * 4            # main input block (f32, double-buffered)
               + 2 * C * halo_l * 4     # halo block (f32, double-buffered)
               + 2 * C * p * 2          # y1 output block (bf16)
               + 4 * C * p * 4          # kernel-2 x / out blocks (f32)
               + 25 * C * p * 2         # im2col scratch (bf16)
               + 10 * C * p * 4)        # matmul / mask / misc intermediates
        if est <= 8 * 1024 * 1024:
            best = th
    return best


def res_block_forward(x, params, row_tile=None):
    """ResBlock forward. x: (N, C, H, W) float32 -> (N, C, H, W) float32."""
    N, C, H, W = x.shape
    x = x.astype(jnp.float32)

    halo_l = 128 * ((4 * W + 2 + 127) // 128)     # lane-aligned halo block size
    TH = _pick_row_tile(H, W, C, halo_l) if row_tile is None else int(row_tile)
    if (TH is None or H % TH or (TH * W) % 128 or (TH * W) % halo_l):
        # TODO(synk): geometries whose row tiles cannot be made lane-aligned
        # need Element-offset halo blocks or a whole-image fallback.
        raise ValueError(f"unsupported geometry H={H}, W={W}, row_tile={TH}")
    n_tiles = H // TH
    P = TH * W

    # Flat, row-padded activation: 2 zero rows on top (vertical 'same' pad),
    # halo_l - 2*W zero lanes at the bottom so the last tile's halo block
    # stays in bounds.  Horizontal padding is replaced by in-kernel masks.
    # TODO(synk): fold the vertical pad/halo into the kernel (Element-offset
    # blocks + edge masking) to avoid this (small) padded HBM copy.
    x_flat = x.reshape(N, C, H * W)
    xpad = jnp.pad(x_flat, ((0, 0), (0, 0), (PAD * W, halo_l - PAD * W)))

    # Per-tap column-validity masks (tap column = w + dx - 2 must be in [0,W)).
    col = jnp.arange(P, dtype=jnp.int32) % W
    mask = jnp.stack([((col + dx - PAD >= 0) & (col + dx - PAD < W))
                      for dx in range(KSIZE)])
    mask = mask.astype(MATMUL_DTYPE).reshape(KSIZE, 1, P)

    # Weight prep: matmul-shaped, bf16 operands (halves weight DMA too).
    w1m = jnp.transpose(params["w1"], (0, 2, 3, 1)).reshape(
        C, KSIZE * KSIZE * C).astype(MATMUL_DTYPE)        # [co, (dy*5+dx)*C+ci]
    b1c = params["b1"].reshape(C, 1).astype(jnp.float32)

    # ---- Kernel 1: 5x5 conv (im2col, single matmul) + BN partial sums ----
    y1, psum, psq = pl.pallas_call(
        functools.partial(_conv5_stats_kernel, width=W),
        out_shape=(
            jax.ShapeDtypeStruct((N, C, H * W), MATMUL_DTYPE),
            jax.ShapeDtypeStruct((N, n_tiles, C, 1), jnp.float32),
            jax.ShapeDtypeStruct((N, n_tiles, C, 1), jnp.float32),
        ),
        grid=(N, n_tiles),
        in_specs=[
            pl.BlockSpec((1, C, P), lambda n, j: (n, 0, j)),              # main
            pl.BlockSpec((1, C, halo_l),
                         lambda n, j: (n, 0, (j + 1) * (TH * W // halo_l))),
            pl.BlockSpec((KSIZE, 1, P), lambda n, j: (0, 0, 0)),          # masks
            pl.BlockSpec((C, KSIZE * KSIZE * C), lambda n, j: (0, 0)),    # w1
            pl.BlockSpec((C, 1), lambda n, j: (0, 0)),                    # b1
        ],
        out_specs=(
            pl.BlockSpec((1, C, P), lambda n, j: (n, 0, j)),
            pl.BlockSpec((1, 1, C, 1), lambda n, j: (n, j, 0, 0)),
            pl.BlockSpec((1, 1, C, 1), lambda n, j: (n, j, 0, 0)),
        ),
        scratch_shapes=[pltpu.VMEM((KSIZE * KSIZE * C, P), MATMUL_DTYPE)],
        compiler_params=pltpu.CompilerParams(
            dimension_semantics=("parallel", "parallel"),
            vmem_limit_bytes=VMEM_LIMIT),
    )(xpad, xpad, mask, w1m, b1c)

    # ---- Fold train-mode BatchNorm (batch statistics, biased variance) ----
    count = float(N * H * W)
    csum = jnp.sum(psum, axis=(0, 1))[:, 0]                  # (C,)
    csq = jnp.sum(psq, axis=(0, 1))[:, 0]                    # (C,)
    mean = csum / count
    var = csq / count - mean * mean        # biased variance (PyTorch BN train)
    inv_std = params["bn_gamma"] / jnp.sqrt(var + EPS)
    scale = inv_std.reshape(C, 1).astype(jnp.float32)
    shift = (params["bn_beta"] - mean * inv_std).reshape(C, 1).astype(jnp.float32)

    w2m = params["w2"].reshape(4 * C, C).astype(MATMUL_DTYPE)
    b2c = params["b2"].reshape(4 * C, 1).astype(jnp.float32)
    w3m = params["w3"].reshape(C, 4 * C).astype(MATMUL_DTYPE)
    b3c = params["b3"].reshape(C, 1).astype(jnp.float32)

    # ---- Kernel 2: BN-apply + 1x1 conv + ReLU + 1x1 conv + residual ----
    out_flat = pl.pallas_call(
        _bn_mlp_res_kernel,
        out_shape=jax.ShapeDtypeStruct((N, C, H * W), jnp.float32),
        grid=(N, n_tiles),
        in_specs=[
            pl.BlockSpec((1, C, P), lambda n, j: (n, 0, j)),     # y1
            pl.BlockSpec((1, C, P), lambda n, j: (n, 0, j)),     # x (residual)
            pl.BlockSpec((C, 1), lambda n, j: (0, 0)),           # scale
            pl.BlockSpec((C, 1), lambda n, j: (0, 0)),           # shift
            pl.BlockSpec((4 * C, C), lambda n, j: (0, 0)),       # w2
            pl.BlockSpec((4 * C, 1), lambda n, j: (0, 0)),       # b2
            pl.BlockSpec((C, 4 * C), lambda n, j: (0, 0)),       # w3
            pl.BlockSpec((C, 1), lambda n, j: (0, 0)),           # b3
        ],
        out_specs=pl.BlockSpec((1, C, P), lambda n, j: (n, 0, j)),
        compiler_params=pltpu.CompilerParams(
            dimension_semantics=("parallel", "parallel"),
            vmem_limit_bytes=VMEM_LIMIT),
    )(y1, x_flat, scale, shift, w2m, b2c, w3m, b3c)

    return out_flat.reshape(N, C, H, W)      # free reshape, already NCHW


# --------------------------- Parameter init ---------------------------------

def init_params(key, C):
    ks = jax.random.split(key, 6)
    lim1 = (C * KSIZE * KSIZE) ** -0.5
    lim2 = C ** -0.5
    lim3 = (4 * C) ** -0.5
    return {
        "w1": jax.random.uniform(ks[0], (C, C, KSIZE, KSIZE), jnp.float32, -lim1, lim1),
        "b1": jax.random.uniform(ks[1], (C,), jnp.float32, -lim1, lim1),
        "bn_gamma": jnp.ones((C,), jnp.float32),
        "bn_beta": jnp.zeros((C,), jnp.float32),
        "w2": jax.random.uniform(ks[2], (4 * C, C, 1, 1), jnp.float32, -lim2, lim2),
        "b2": jax.random.uniform(ks[3], (4 * C,), jnp.float32, -lim2, lim2),
        "w3": jax.random.uniform(ks[4], (C, 4 * C, 1, 1), jnp.float32, -lim3, lim3),
        "b3": jax.random.uniform(ks[5], (C,), jnp.float32, -lim3, lim3),
    }


# ----------------------------- Pure-JAX reference ---------------------------

def reference_forward(x, params):
    C = x.shape[1]
    x = x.astype(jnp.float32)
    y1 = jax.lax.conv_general_dilated(
        x, params["w1"], window_strides=(1, 1), padding="SAME",
        dimension_numbers=("NCHW", "OIHW", "NCHW"))
    y1 = y1 + params["b1"][None, :, None, None]
    mean = jnp.mean(y1, axis=(0, 2, 3), keepdims=True)
    var = jnp.var(y1, axis=(0, 2, 3), keepdims=True)         # biased (train BN)
    h = (y1 - mean) / jnp.sqrt(var + EPS)
    h = h * params["bn_gamma"][None, :, None, None] + params["bn_beta"][None, :, None, None]
    w2 = params["w2"].reshape(4 * C, C)
    w3 = params["w3"].reshape(C, 4 * C)
    h = jnp.maximum(jnp.einsum("nchw,dc->ndhw", h, w2)
                    + params["b2"][None, :, None, None], 0.0)
    h = jnp.einsum("ndhw,cd->nchw", h, w3) + params["b3"][None, :, None, None]
    return h + x


# --------------------------------- Main --------------------------------------

if __name__ == "__main__":
    key = jax.random.PRNGKey(0)
    kx, kp = jax.random.split(key)

    N, C, H, W = 2, 4, 16, 16
    x = jax.random.normal(kx, (N, C, H, W), jnp.float32)
    params = init_params(kp, C)

    fwd = jax.jit(res_block_forward, static_argnames=("row_tile",))

    out = jax.block_until_ready(fwd(x, params))
    ref = jax.block_until_ready(reference_forward(x, params))
    assert out.shape == (N, C, H, W)
    # bf16 MXU operands (f32 accumulation / BN stats / residual): ~1e-3 error.
    err = float(jnp.max(jnp.abs(out - ref)))
    assert err < 5e-2, f"mismatch vs JAX reference (max abs err {err})"

    # Also exercise the multi-row-tile (interior halo) path explicitly.
    out_tiled = jax.block_until_ready(fwd(x, params, row_tile=8))
    err_tiled = float(jnp.max(jnp.abs(out_tiled - ref)))
    assert err_tiled < 5e-2, f"tiled-path mismatch (max abs err {err_tiled})"

    print("KERNEL_OK")
</pallas_src>

<mosaic_0001>
module attributes {stable_mosaic.version = 11 : i64} {
  func.func @_conv5_stats_kernel(%arg0: i32, %arg1: i32, %arg2: memref<1x4x256xf32, #tpu.memory_space<vmem>>, %arg3: memref<1x4x128xf32, #tpu.memory_space<vmem>>, %arg4: memref<5x1x256xbf16, #tpu.memory_space<vmem>>, %arg5: memref<4x100xbf16, #tpu.memory_space<vmem>>, %arg6: memref<4x1xf32, #tpu.memory_space<vmem>>, %arg7: memref<1x4x256xbf16, #tpu.memory_space<vmem>>, %arg8: memref<1x1x4x1xf32, #tpu.memory_space<vmem>>, %arg9: memref<1x1x4x1xf32, #tpu.memory_space<vmem>>, %arg10: memref<100x256xbf16, #tpu.memory_space<vmem>>) attributes {dimension_semantics = [#tpu.dimension_semantics<parallel>, #tpu.dimension_semantics<parallel>], iteration_bounds = array<i64: 2, 1>, scalar_prefetch = 0 : i64, scratch_operands = 1 : i64, tpu.core_type = #tpu.core_type<tc>, window_params = [{transform_indices = @transform_0, window_bounds = array<i64: 1, 4, 256>}, {transform_indices = @transform_1, window_bounds = array<i64: 1, 4, 128>}, {pipeline_mode = #tpu.pipeline_mode<synchronous>, transform_indices = @transform_2, window_bounds = array<i64: 5, 1, 256>}, {pipeline_mode = #tpu.pipeline_mode<synchronous>, transform_indices = @transform_3, window_bounds = array<i64: 4, 100>}, {pipeline_mode = #tpu.pipeline_mode<synchronous>, transform_indices = @transform_4, window_bounds = array<i64: 4, 1>}, {transform_indices = @transform_5, window_bounds = array<i64: 1, 4, 256>}, {transform_indices = @transform_6, window_bounds = array<i64: 1, 1, 4, 1>}, {transform_indices = @transform_7, window_bounds = array<i64: 1, 1, 4, 1>}]} {
    %c0 = arith.constant 0 : index
    %c0_0 = arith.constant 0 : index
    %c0_1 = arith.constant 0 : index
    %0 = vector.load %arg2[%c0, %c0_0, %c0_1] : memref<1x4x256xf32, #tpu.memory_space<vmem>>, vector<1x4x256xf32>
    %1 = vector.shape_cast %0 : vector<1x4x256xf32> to vector<4x256xf32>
    %2 = arith.truncf %1 : vector<4x256xf32> to vector<4x256xbf16>
    %c0_2 = arith.constant 0 : index
    %c0_3 = arith.constant 0 : index
    %c0_4 = arith.constant 0 : index
    %3 = vector.load %arg3[%c0_2, %c0_3, %c0_4] : memref<1x4x128xf32, #tpu.memory_space<vmem>>, vector<1x4x128xf32>
    %4 = vector.shape_cast %3 : vector<1x4x128xf32> to vector<4x128xf32>
    %5 = vector.extract_strided_slice %4 {offsets = [0, 0], sizes = [4, 66], strides = [1, 1]} : vector<4x128xf32> to vector<4x66xf32>
    %6 = arith.truncf %5 : vector<4x66xf32> to vector<4x66xbf16>
    %cst = arith.constant 0.000000e+00 : bf16
    %7 = vector.broadcast %cst : bf16 to vector<4x2xbf16>
    %8 = tpu.concatenate %7, %2, %6 in 1 : vector<4x2xbf16>, vector<4x256xbf16>, vector<4x66xbf16> -> vector<4x324xbf16>
    %9 = vector.extract_strided_slice %8 {offsets = [0, 0], sizes = [4, 256], strides = [1, 1]} : vector<4x324xbf16> to vector<4x256xbf16>
    %c0_5 = arith.constant 0 : index
    %c0_6 = arith.constant 0 : index
    %c0_7 = arith.constant 0 : index
    %10 = vector.load %arg4[%c0_5, %c0_6, %c0_7] : memref<5x1x256xbf16, #tpu.memory_space<vmem>>, vector<1x1x256xbf16>
    %11 = vector.shape_cast %10 : vector<1x1x256xbf16> to vector<1x256xbf16>
    %12 = vector.broadcast %11 : vector<1x256xbf16> to vector<4x256xbf16>
    %13 = arith.mulf %9, %12 : vector<4x256xbf16>
    %c0_8 = arith.constant 0 : index
    %c0_9 = arith.constant 0 : index
    %14 = vector.load %arg10[%c0_8, %c0_9] : memref<100x256xbf16, #tpu.memory_space<vmem>>, vector<4x256xbf16>
    tpu.vector_store %arg10[%c0_8, %c0_9], %13 {strides = array<i32>} : memref<100x256xbf16, #tpu.memory_space<vmem>>, vector<4x256xbf16>,
    %15 = vector.extract_strided_slice %8 {offsets = [0, 1], sizes = [4, 256], strides = [1, 1]} : vector<4x324xbf16> to vector<4x256xbf16>
    %c1 = arith.constant 1 : index
    %c0_10 = arith.constant 0 : index
    %c0_11 = arith.constant 0 : index
    %16 = vector.load %arg4[%c1, %c0_10, %c0_11] : memref<5x1x256xbf16, #tpu.memory_space<vmem>>, vector<1x1x256xbf16>
    %17 = vector.shape_cast %16 : vector<1x1x256xbf16> to vector<1x256xbf16>
    %18 = vector.broadcast %17 : vector<1x256xbf16> to vector<4x256xbf16>
    %19 = arith.mulf %15, %18 : vector<4x256xbf16>
    %c4 = arith.constant 4 : index
    %c0_12 = arith.constant 0 : index
    %20 = vector.load %arg10[%c4, %c0_12] : memref<100x256xbf16, #tpu.memory_space<vmem>>, vector<4x256xbf16>
    tpu.vector_store %arg10[%c4, %c0_12], %19 {strides = array<i32>} : memref<100x256xbf16, #tpu.memory_space<vmem>>, vector<4x256xbf16>,
    %21 = vector.extract_strided_slice %8 {offsets = [0, 2], sizes = [4, 256], strides = [1, 1]} : vector<4x324xbf16> to vector<4x256xbf16>
    %c8 = arith.constant 8 : index
    %c0_13 = arith.constant 0 : index
    %22 = vector.load %arg10[%c8, %c0_13] : memref<100x256xbf16, #tpu.memory_space<vmem>>, vector<4x256xbf16>
    tpu.vector_store %arg10[%c8, %c0_13], %21 {strides = array<i32>} : memref<100x256xbf16, #tpu.memory_space<vmem>>, vector<4x256xbf16>,
    %23 = vector.extract_strided_slice %8 {offsets = [0, 3], sizes = [4, 256], strides = [1, 1]} : vector<4x324xbf16> to vector<4x256xbf16>
    %c3 = arith.constant 3 : index
    %c0_14 = arith.constant 0 : index
    %c0_15 = arith.constant 0 : index
    %24 = vector.load %arg4[%c3, %c0_14, %c0_15] : memref<5x1x256xbf16, #tpu.memory_space<vmem>>, vector<1x1x256xbf16>
    %25 = vector.shape_cast %24 : vector<1x1x256xbf16> to vector<1x256xbf16>
    %26 = vector.broadcast %25 : vector<1x256xbf16> to vector<4x256xbf16>
    %27 = arith.mulf %23, %26 : vector<4x256xbf16>
    %c12 = arith.constant 12 : index
    %c0_16 = arith.constant 0 : index
    %28 = vector.load %arg10[%c12, %c0_16] : memref<100x256xbf16, #tpu.memory_space<vmem>>, vector<4x256xbf16>
    tpu.vector_store %arg10[%c12, %c0_16], %27 {strides = array<i32>} : memref<100x256xbf16, #tpu.memory_space<vmem>>, vector<4x256xbf16>,
    %29 = vector.extract_strided_slice %8 {offsets = [0, 4], sizes = [4, 256], strides = [1, 1]} : vector<4x324xbf16> to vector<4x256xbf16>
    %c4_17 = arith.constant 4 : index
    %c0_18 = arith.constant 0 : index
    %c0_19 = arith.constant 0 : index
    %30 = vector.load %arg4[%c4_17, %c0_18, %c0_19] : memref<5x1x256xbf16, #tpu.memory_space<vmem>>, vector<1x1x256xbf16>
    %31 = vector.shape_cast %30 : vector<1x1x256xbf16> to vector<1x256xbf16>
    %32 = vector.broadcast %31 : vector<1x256xbf16> to vector<4x256xbf16>
    %33 = arith.mulf %29, %32 : vector<4x256xbf16>
    %c16 = arith.constant 16 : index
    %c0_20 = arith.constant 0 : index
    %34 = vector.load %arg10[%c16, %c0_20] : memref<100x256xbf16, #tpu.memory_space<vmem>>, vector<4x256xbf16>
    tpu.vector_store %arg10[%c16, %c0_20], %33 {strides = array<i32>} : memref<100x256xbf16, #tpu.memory_space<vmem>>, vector<4x256xbf16>,
    %35 = vector.extract_strided_slice %8 {offsets = [0, 16], sizes = [4, 256], strides = [1, 1]} : vector<4x324xbf16> to vector<4x256xbf16>
    %c0_21 = arith.constant 0 : index
    %c0_22 = arith.constant 0 : index
    %c0_23 = arith.constant 0 : index
    %36 = vector.load %arg4[%c0_21, %c0_22, %c0_23] : memref<5x1x256xbf16, #tpu.memory_space<vmem>>, vector<1x1x256xbf16>
    %37 = vector.shape_cast %36 : vector<1x1x256xbf16> to vector<1x256xbf16>
    %38 = vector.broadcast %37 : vector<1x256xbf16> to vector<4x256xbf16>
    %39 = arith.mulf %35, %38 : vector<4x256xbf16>
    %c20 = arith.constant 20 : index
    %c0_24 = arith.constant 0 : index
    %40 = vector.load %arg10[%c20, %c0_24] : memref<100x256xbf16, #tpu.memory_space<vmem>>, vector<4x256xbf16>
    tpu.vector_store %arg10[%c20, %c0_24], %39 {strides = array<i32>} : memref<100x256xbf16, #tpu.memory_space<vmem>>, vector<4x256xbf16>,
    %41 = vector.extract_strided_slice %8 {offsets = [0, 17], sizes = [4, 256], strides = [1, 1]} : vector<4x324xbf16> to vector<4x256xbf16>
    %c1_25 = arith.constant 1 : index
    %c0_26 = arith.constant 0 : index
    %c0_27 = arith.constant 0 : index
    %42 = vector.load %arg4[%c1_25, %c0_26, %c0_27] : memref<5x1x256xbf16, #tpu.memory_space<vmem>>, vector<1x1x256xbf16>
    %43 = vector.shape_cast %42 : vector<1x1x256xbf16> to vector<1x256xbf16>
    %44 = vector.broadcast %43 : vector<1x256xbf16> to vector<4x256xbf16>
    %45 = arith.mulf %41, %44 : vector<4x256xbf16>
    %c24 = arith.constant 24 : index
    %c0_28 = arith.constant 0 : index
    %46 = vector.load %arg10[%c24, %c0_28] : memref<100x256xbf16, #tpu.memory_space<vmem>>, vector<4x256xbf16>
    tpu.vector_store %arg10[%c24, %c0_28], %45 {strides = array<i32>} : memref<100x256xbf16, #tpu.memory_space<vmem>>, vector<4x256xbf16>,
    %47 = vector.extract_strided_slice %8 {offsets = [0, 18], sizes = [4, 256], strides = [1, 1]} : vector<4x324xbf16> to vector<4x256xbf16>
    %c28 = arith.constant 28 : index
    %c0_29 = arith.constant 0 : index
    %48 = vector.load %arg10[%c28, %c0_29] : memref<100x256xbf16, #tpu.memory_space<vmem>>, vector<4x256xbf16>
    tpu.vector_store %arg10[%c28, %c0_29], %47 {strides = array<i32>} : memref<100x256xbf16, #tpu.memory_space<vmem>>, vector<4x256xbf16>,
    %49 = vector.extract_strided_slice %8 {offsets = [0, 19], sizes = [4, 256], strides = [1, 1]} : vector<4x324xbf16> to vector<4x256xbf16>
    %c3_30 = arith.constant 3 : index
    %c0_31 = arith.constant 0 : index
    %c0_32 = arith.constant 0 : index
    %50 = vector.load %arg4[%c3_30, %c0_31, %c0_32] : memref<5x1x256xbf16, #tpu.memory_space<vmem>>, vector<1x1x256xbf16>
    %51 = vector.shape_cast %50 : vector<1x1x256xbf16> to vector<1x256xbf16>
    %52 = vector.broadcast %51 : vector<1x256xbf16> to vector<4x256xbf16>
    %53 = arith.mulf %49, %52 : vector<4x256xbf16>
    %c32 = arith.constant 32 : index
    %c0_33 = arith.constant 0 : index
    %54 = vector.load %arg10[%c32, %c0_33] : memref<100x256xbf16, #tpu.memory_space<vmem>>, vector<4x256xbf16>
    tpu.vector_store %arg10[%c32, %c0_33], %53 {strides = array<i32>} : memref<100x256xbf16, #tpu.memory_space<vmem>>, vector<4x256xbf16>,
    %55 = vector.extract_strided_slice %8 {offsets = [0, 20], sizes = [4, 256], strides = [1, 1]} : vector<4x324xbf16> to vector<4x256xbf16>
    %c4_34 = arith.constant 4 : index
    %c0_35 = arith.constant 0 : index
    %c0_36 = arith.constant 0 : index
    %56 = vector.load %arg4[%c4_34, %c0_35, %c0_36] : memref<5x1x256xbf16, #tpu.memory_space<vmem>>, vector<1x1x256xbf16>
    %57 = vector.shape_cast %56 : vector<1x1x256xbf16> to vector<1x256xbf16>
    %58 = vector.broadcast %57 : vector<1x256xbf16> to vector<4x256xbf16>
    %59 = arith.mulf %55, %58 : vector<4x256xbf16>
    %c36 = arith.constant 36 : index
    %c0_37 = arith.constant 0 : index
    %60 = vector.load %arg10[%c36, %c0_37] : memref<100x256xbf16, #tpu.memory_space<vmem>>, vector<4x256xbf16>
    tpu.vector_store %arg10[%c36, %c0_37], %59 {strides = array<i32>} : memref<100x256xbf16, #tpu.memory_space<vmem>>, vector<4x256xbf16>,
    %61 = vector.extract_strided_slice %8 {offsets = [0, 32], sizes = [4, 256], strides = [1, 1]} : vector<4x324xbf16> to vector<4x256xbf16>
    %c0_38 = arith.constant 0 : index
    %c0_39 = arith.constant 0 : index
    %c0_40 = arith.constant 0 : index
    %62 = vector.load %arg4[%c0_38, %c0_39, %c0_40] : memref<5x1x256xbf16, #tpu.memory_space<vmem>>, vector<1x1x256xbf16>
    %63 = vector.shape_cast %62 : vector<1x1x256xbf16> to vector<1x256xbf16>
    %64 = vector.broadcast %63 : vector<1x256xbf16> to vector<4x256xbf16>
    %65 = arith.mulf %61, %64 : vector<4x256xbf16>
    %c40 = arith.constant 40 : index
    %c0_41 = arith.constant 0 : index
    %66 = vector.load %arg10[%c40, %c0_41] : memref<100x256xbf16, #tpu.memory_space<vmem>>, vector<4x256xbf16>
    tpu.vector_store %arg10[%c40, %c0_41], %65 {strides = array<i32>} : memref<100x256xbf16, #tpu.memory_space<vmem>>, vector<4x256xbf16>,
    %67 = vector.extract_strided_slice %8 {offsets = [0, 33], sizes = [4, 256], strides = [1, 1]} : vector<4x324xbf16> to vector<4x256xbf16>
    %c1_42 = arith.constant 1 : index
    %c0_43 = arith.constant 0 : index
    %c0_44 = arith.constant 0 : index
    %68 = vector.load %arg4[%c1_42, %c0_43, %c0_44] : memref<5x1x256xbf16, #tpu.memory_space<vmem>>, vector<1x1x256xbf16>
    %69 = vector.shape_cast %68 : vector<1x1x256xbf16> to vector<1x256xbf16>
    %70 = vector.broadcast %69 : vector<1x256xbf16> to vector<4x256xbf16>
    %71 = arith.mulf %67, %70 : vector<4x256xbf16>
    %c44 = arith.constant 44 : index
    %c0_45 = arith.constant 0 : index
    %72 = vector.load %arg10[%c44, %c0_45] : memref<100x256xbf16, #tpu.memory_space<vmem>>, vector<4x256xbf16>
    tpu.vector_store %arg10[%c44, %c0_45], %71 {strides = array<i32>} : memref<100x256xbf16, #tpu.memory_space<vmem>>, vector<4x256xbf16>,
    %73 = vector.extract_strided_slice %8 {offsets = [0, 34], sizes = [4, 256], strides = [1, 1]} : vector<4x324xbf16> to vector<4x256xbf16>
    %c48 = arith.constant 48 : index
    %c0_46 = arith.constant 0 : index
    %74 = vector.load %arg10[%c48, %c0_46] : memref<100x256xbf16, #tpu.memory_space<vmem>>, vector<4x256xbf16>
    tpu.vector_store %arg10[%c48, %c0_46], %73 {strides = array<i32>} : memref<100x256xbf16, #tpu.memory_space<vmem>>, vector<4x256xbf16>,
    %75 = vector.extract_strided_slice %8 {offsets = [0, 35], sizes = [4, 256], strides = [1, 1]} : vector<4x324xbf16> to vector<4x256xbf16>
    %c3_47 = arith.constant 3 : index
    %c0_48 = arith.constant 0 : index
    %c0_49 = arith.constant 0 : index
    %76 = vector.load %arg4[%c3_47, %c0_48, %c0_49] : memref<5x1x256xbf16, #tpu.memory_space<vmem>>, vector<1x1x256xbf16>
    %77 = vector.shape_cast %76 : vector<1x1x256xbf16> to vector<1x256xbf16>
    %78 = vector.broadcast %77 : vector<1x256xbf16> to vector<4x256xbf16>
    %79 = arith.mulf %75, %78 : vector<4x256xbf16>
    %c52 = arith.constant 52 : index
    %c0_50 = arith.constant 0 : index
    %80 = vector.load %arg10[%c52, %c0_50] : memref<100x256xbf16, #tpu.memory_space<vmem>>, vector<4x256xbf16>
    tpu.vector_store %arg10[%c52, %c0_50], %79 {strides = array<i32>} : memref<100x256xbf16, #tpu.memory_space<vmem>>, vector<4x256xbf16>,
    %81 = vector.extract_strided_slice %8 {offsets = [0, 36], sizes = [4, 256], strides = [1, 1]} : vector<4x324xbf16> to vector<4x256xbf16>
    %c4_51 = arith.constant 4 : index
    %c0_52 = arith.constant 0 : index
    %c0_53 = arith.constant 0 : index
    %82 = vector.load %arg4[%c4_51, %c0_52, %c0_53] : memref<5x1x256xbf16, #tpu.memory_space<vmem>>, vector<1x1x256xbf16>
    %83 = vector.shape_cast %82 : vector<1x1x256xbf16> to vector<1x256xbf16>
    %84 = vector.broadcast %83 : vector<1x256xbf16> to vector<4x256xbf16>
    %85 = arith.mulf %81, %84 : vector<4x256xbf16>
    %c56 = arith.constant 56 : index
    %c0_54 = arith.constant 0 : index
    %86 = vector.load %arg10[%c56, %c0_54] : memref<100x256xbf16, #tpu.memory_space<vmem>>, vector<4x256xbf16>
    tpu.vector_store %arg10[%c56, %c0_54], %85 {strides = array<i32>} : memref<100x256xbf16, #tpu.memory_space<vmem>>, vector<4x256xbf16>,
    %87 = vector.extract_strided_slice %8 {offsets = [0, 48], sizes = [4, 256], strides = [1, 1]} : vector<4x324xbf16> to vector<4x256xbf16>
    %c0_55 = arith.constant 0 : index
    %c0_56 = arith.constant 0 : index
    %c0_57 = arith.constant 0 : index
    %88 = vector.load %arg4[%c0_55, %c0_56, %c0_57] : memref<5x1x256xbf16, #tpu.memory_space<vmem>>, vector<1x1x256xbf16>
    %89 = vector.shape_cast %88 : vector<1x1x256xbf16> to vector<1x256xbf16>
    %90 = vector.broadcast %89 : vector<1x256xbf16> to vector<4x256xbf16>
    %91 = arith.mulf %87, %90 : vector<4x256xbf16>
    %c60 = arith.constant 60 : index
    %c0_58 = arith.constant 0 : index
    %92 = vector.load %arg10[%c60, %c0_58] : memref<100x256xbf16, #tpu.memory_space<vmem>>, vector<4x256xbf16>
    tpu.vector_store %arg10[%c60, %c0_58], %91 {strides = array<i32>} : memref<100x256xbf16, #tpu.memory_space<vmem>>, vector<4x256xbf16>,
    %93 = vector.extract_strided_slice %8 {offsets = [0, 49], sizes = [4, 256], strides = [1, 1]} : vector<4x324xbf16> to vector<4x256xbf16>
    %c1_59 = arith.constant 1 : index
    %c0_60 = arith.constant 0 : index
    %c0_61 = arith.constant 0 : index
    %94 = vector.load %arg4[%c1_59, %c0_60, %c0_61] : memref<5x1x256xbf16, #tpu.memory_space<vmem>>, vector<1x1x256xbf16>
    %95 = vector.shape_cast %94 : vector<1x1x256xbf16> to vector<1x256xbf16>
    %96 = vector.broadcast %95 : vector<1x256xbf16> to vector<4x256xbf16>
    %97 = arith.mulf %93, %96 : vector<4x256xbf16>
    %c64 = arith.constant 64 : index
    %c0_62 = arith.constant 0 : index
    %98 = vector.load %arg10[%c64, %c0_62] : memref<100x256xbf16, #tpu.memory_space<vmem>>, vector<4x256xbf16>
    tpu.vector_store %arg10[%c64, %c0_62], %97 {strides = array<i32>} : memref<100x256xbf16, #tpu.memory_space<vmem>>, vector<4x256xbf16>,
    %99 = vector.extract_strided_slice %8 {offsets = [0, 50], sizes = [4, 256], strides = [1, 1]} : vector<4x324xbf16> to vector<4x256xbf16>
    %c68 = arith.constant 68 : index
    %c0_63 = arith.constant 0 : index
    %100 = vector.load %arg10[%c68, %c0_63] : memref<100x256xbf16, #tpu.memory_space<vmem>>, vector<4x256xbf16>
    tpu.vector_store %arg10[%c68, %c0_63], %99 {strides = array<i32>} : memref<100x256xbf16, #tpu.memory_space<vmem>>, vector<4x256xbf16>,
    %101 = vector.extract_strided_slice %8 {offsets = [0, 51], sizes = [4, 256], strides = [1, 1]} : vector<4x324xbf16> to vector<4x256xbf16>
    %c3_64 = arith.constant 3 : index
    %c0_65 = arith.constant 0 : index
    %c0_66 = arith.constant 0 : index
    %102 = vector.load %arg4[%c3_64, %c0_65, %c0_66] : memref<5x1x256xbf16, #tpu.memory_space<vmem>>, vector<1x1x256xbf16>
    %103 = vector.shape_cast %102 : vector<1x1x256xbf16> to vector<1x256xbf16>
    %104 = vector.broadcast %103 : vector<1x256xbf16> to vector<4x256xbf16>
    %105 = arith.mulf %101, %104 : vector<4x256xbf16>
    %c72 = arith.constant 72 : index
    %c0_67 = arith.constant 0 : index
    %106 = vector.load %arg10[%c72, %c0_67] : memref<100x256xbf16, #tpu.memory_space<vmem>>, vector<4x256xbf16>
    tpu.vector_store %arg10[%c72, %c0_67], %105 {strides = array<i32>} : memref<100x256xbf16, #tpu.memory_space<vmem>>, vector<4x256xbf16>,
    %107 = vector.extract_strided_slice %8 {offsets = [0, 52], sizes = [4, 256], strides = [1, 1]} : vector<4x324xbf16> to vector<4x256xbf16>
    %c4_68 = arith.constant 4 : index
    %c0_69 = arith.constant 0 : index
    %c0_70 = arith.constant 0 : index
    %108 = vector.load %arg4[%c4_68, %c0_69, %c0_70] : memref<5x1x256xbf16, #tpu.memory_space<vmem>>, vector<1x1x256xbf16>
    %109 = vector.shape_cast %108 : vector<1x1x256xbf16> to vector<1x256xbf16>
    %110 = vector.broadcast %109 : vector<1x256xbf16> to vector<4x256xbf16>
    %111 = arith.mulf %107, %110 : vector<4x256xbf16>
    %c76 = arith.constant 76 : index
    %c0_71 = arith.constant 0 : index
    %112 = vector.load %arg10[%c76, %c0_71] : memref<100x256xbf16, #tpu.memory_space<vmem>>, vector<4x256xbf16>
    tpu.vector_store %arg10[%c76, %c0_71], %111 {strides = array<i32>} : memref<100x256xbf16, #tpu.memory_space<vmem>>, vector<4x256xbf16>,
    %113 = vector.extract_strided_slice %8 {offsets = [0, 64], sizes = [4, 256], strides = [1, 1]} : vector<4x324xbf16> to vector<4x256xbf16>
    %c0_72 = arith.constant 0 : index
    %c0_73 = arith.constant 0 : index
    %c0_74 = arith.constant 0 : index
    %114 = vector.load %arg4[%c0_72, %c0_73, %c0_74] : memref<5x1x256xbf16, #tpu.memory_space<vmem>>, vector<1x1x256xbf16>
    %115 = vector.shape_cast %114 : vector<1x1x256xbf16> to vector<1x256xbf16>
    %116 = vector.broadcast %115 : vector<1x256xbf16> to vector<4x256xbf16>
    %117 = arith.mulf %113, %116 : vector<4x256xbf16>
    %c80 = arith.constant 80 : index
    %c0_75 = arith.constant 0 : index
    %118 = vector.load %arg10[%c80, %c0_75] : memref<100x256xbf16, #tpu.memory_space<vmem>>, vector<4x256xbf16>
    tpu.vector_store %arg10[%c80, %c0_75], %117 {strides = array<i32>} : memref<100x256xbf16, #tpu.memory_space<vmem>>, vector<4x256xbf16>,
    %119 = vector.extract_strided_slice %8 {offsets = [0, 65], sizes = [4, 256], strides = [1, 1]} : vector<4x324xbf16> to vector<4x256xbf16>
    %c1_76 = arith.constant 1 : index
    %c0_77 = arith.constant 0 : index
    %c0_78 = arith.constant 0 : index
    %120 = vector.load %arg4[%c1_76, %c0_77, %c0_78] : memref<5x1x256xbf16, #tpu.memory_space<vmem>>, vector<1x1x256xbf16>
    %121 = vector.shape_cast %120 : vector<1x1x256xbf16> to vector<1x256xbf16>
    %122 = vector.broadcast %121 : vector<1x256xbf16> to vector<4x256xbf16>
    %123 = arith.mulf %119, %122 : vector<4x256xbf16>
    %c84 = arith.constant 84 : index
    %c0_79 = arith.constant 0 : index
    %124 = vector.load %arg10[%c84, %c0_79] : memref<100x256xbf16, #tpu.memory_space<vmem>>, vector<4x256xbf16>
    tpu.vector_store %arg10[%c84, %c0_79], %123 {strides = array<i32>} : memref<100x256xbf16, #tpu.memory_space<vmem>>, vector<4x256xbf16>,
    %125 = vector.extract_strided_slice %8 {offsets = [0, 66], sizes = [4, 256], strides = [1, 1]} : vector<4x324xbf16> to vector<4x256xbf16>
    %c88 = arith.constant 88 : index
    %c0_80 = arith.constant 0 : index
    %126 = vector.load %arg10[%c88, %c0_80] : memref<100x256xbf16, #tpu.memory_space<vmem>>, vector<4x256xbf16>
    tpu.vector_store %arg10[%c88, %c0_80], %125 {strides = array<i32>} : memref<100x256xbf16, #tpu.memory_space<vmem>>, vector<4x256xbf16>,
    %127 = vector.extract_strided_slice %8 {offsets = [0, 67], sizes = [4, 256], strides = [1, 1]} : vector<4x324xbf16> to vector<4x256xbf16>
    %c3_81 = arith.constant 3 : index
    %c0_82 = arith.constant 0 : index
    %c0_83 = arith.constant 0 : index
    %128 = vector.load %arg4[%c3_81, %c0_82, %c0_83] : memref<5x1x256xbf16, #tpu.memory_space<vmem>>, vector<1x1x256xbf16>
    %129 = vector.shape_cast %128 : vector<1x1x256xbf16> to vector<1x256xbf16>
    %130 = vector.broadcast %129 : vector<1x256xbf16> to vector<4x256xbf16>
    %131 = arith.mulf %127, %130 : vector<4x256xbf16>
    %c92 = arith.constant 92 : index
    %c0_84 = arith.constant 0 : index
    %132 = vector.load %arg10[%c92, %c0_84] : memref<100x256xbf16, #tpu.memory_space<vmem>>, vector<4x256xbf16>
    tpu.vector_store %arg10[%c92, %c0_84], %131 {strides = array<i32>} : memref<100x256xbf16, #tpu.memory_space<vmem>>, vector<4x256xbf16>,
    %133 = vector.extract_strided_slice %8 {offsets = [0, 68], sizes = [4, 256], strides = [1, 1]} : vector<4x324xbf16> to vector<4x256xbf16>
    %c4_85 = arith.constant 4 : index
    %c0_86 = arith.constant 0 : index
    %c0_87 = arith.constant 0 : index
    %134 = vector.load %arg4[%c4_85, %c0_86, %c0_87] : memref<5x1x256xbf16, #tpu.memory_space<vmem>>, vector<1x1x256xbf16>
    %135 = vector.shape_cast %134 : vector<1x1x256xbf16> to vector<1x256xbf16>
    %136 = vector.broadcast %135 : vector<1x256xbf16> to vector<4x256xbf16>
    %137 = arith.mulf %133, %136 : vector<4x256xbf16>
    %c96 = arith.constant 96 : index
    %c0_88 = arith.constant 0 : index
    %138 = vector.load %arg10[%c96, %c0_88] : memref<100x256xbf16, #tpu.memory_space<vmem>>, vector<4x256xbf16>
    tpu.vector_store %arg10[%c96, %c0_88], %137 {strides = array<i32>} : memref<100x256xbf16, #tpu.memory_space<vmem>>, vector<4x256xbf16>,
    %c0_89 = arith.constant 0 : index
    %c0_90 = arith.constant 0 : index
    %139 = vector.load %arg5[%c0_89, %c0_90] : memref<4x100xbf16, #tpu.memory_space<vmem>>, vector<4x100xbf16>
    %c0_91 = arith.constant 0 : index
    %c0_92 = arith.constant 0 : index
    %140 = vector.load %arg10[%c0_91, %c0_92] : memref<100x256xbf16, #tpu.memory_space<vmem>>, vector<100x256xbf16>
    %cst_93 = arith.constant dense<0.000000e+00> : vector<4x256xf32>
    %141 = tpu.matmul %139, %140, %cst_93 {dimension_numbers = #tpu.dot_dimension_numbers<[1], [0], [0], [1], [0, 0, 1, 1], [], []>} : vector<4x100xbf16>, vector<100x256xbf16>, vector<4x256xf32> -> vector<4x256xf32>
    %c0_94 = arith.constant 0 : index
    %c0_95 = arith.constant 0 : index
    %142 = vector.load %arg6[%c0_94, %c0_95] : memref<4x1xf32, #tpu.memory_space<vmem>>, vector<4x1xf32>
    %143 = vector.broadcast %142 : vector<4x1xf32> to vector<4x256xf32>
    %144 = arith.addf %141, %143 : vector<4x256xf32>
    %145 = arith.truncf %144 : vector<4x256xf32> to vector<4x256xbf16>
    %146 = vector.shape_cast %145 : vector<4x256xbf16> to vector<1x4x256xbf16>
    %c0_96 = arith.constant 0 : index
    %c0_97 = arith.constant 0 : index
    %c0_98 = arith.constant 0 : index
    %147 = vector.load %arg7[%c0_96, %c0_97, %c0_98] : memref<1x4x256xbf16, #tpu.memory_space<vmem>>, vector<1x4x256xbf16>
    tpu.vector_store %arg7[%c0_96, %c0_97, %c0_98], %146 {strides = array<i32>} : memref<1x4x256xbf16, #tpu.memory_space<vmem>>, vector<1x4x256xbf16>,
    %cst_99 = arith.constant dense<0.000000e+00> : vector<4xf32>
    %148 = vector.multi_reduction <add>, %144, %cst_99 [1] : vector<4x256xf32> to vector<4xf32>
    %149 = vector.shape_cast %148 : vector<4xf32> to vector<4x1xf32>
    %150 = vector.shape_cast %149 : vector<4x1xf32> to vector<1x1x4x1xf32>
    %c0_100 = arith.constant 0 : index
    %c0_101 = arith.constant 0 : index
    %c0_102 = arith.constant 0 : index
    %c0_103 = arith.constant 0 : index
    %151 = vector.load %arg8[%c0_100, %c0_101, %c0_102, %c0_103] : memref<1x1x4x1xf32, #tpu.memory_space<vmem>>, vector<1x1x4x1xf32>
    tpu.vector_store %arg8[%c0_100, %c0_101, %c0_102, %c0_103], %150 {strides = array<i32>} : memref<1x1x4x1xf32, #tpu.memory_space<vmem>>, vector<1x1x4x1xf32>,
    %152 = arith.mulf %144, %144 : vector<4x256xf32>
    %cst_104 = arith.constant dense<0.000000e+00> : vector<4xf32>
    %153 = vector.multi_reduction <add>, %152, %cst_104 [1] : vector<4x256xf32> to vector<4xf32>
    %154 = vector.shape_cast %153 : vector<4xf32> to vector<4x1xf32>
    %155 = vector.shape_cast %154 : vector<4x1xf32> to vector<1x1x4x1xf32>
    %c0_105 = arith.constant 0 : index
    %c0_106 = arith.constant 0 : index
    %c0_107 = arith.constant 0 : index
    %c0_108 = arith.constant 0 : index
    %156 = vector.load %arg9[%c0_105, %c0_106, %c0_107, %c0_108] : memref<1x1x4x1xf32, #tpu.memory_space<vmem>>, vector<1x1x4x1xf32>
    tpu.vector_store %arg9[%c0_105, %c0_106, %c0_107, %c0_108], %155 {strides = array<i32>} : memref<1x1x4x1xf32, #tpu.memory_space<vmem>>, vector<1x1x4x1xf32>,
    return
  }
  func.func @transform_0(%arg0: i32, %arg1: i32) -> (i32, i32, i32) {
    %c0_i32 = arith.constant 0 : i32
    %c0_i32_0 = arith.constant 0 : i32
    return %arg0, %c0_i32, %arg1 : i32, i32, i32
  }
  func.func @transform_1(%arg0: i32, %arg1: i32) -> (i32, i32, i32) {
    %c1_i32 = arith.constant 1 : i32
    %0 = arith.addi %arg1, %c1_i32 : i32
    %c2_i32 = arith.constant 2 : i32
    %1 = arith.muli %0, %c2_i32 : i32
    %c0_i32 = arith.constant 0 : i32
    %c0_i32_0 = arith.constant 0 : i32
    return %arg0, %c0_i32, %1 : i32, i32, i32
  }
  func.func @transform_2(%arg0: i32, %arg1: i32) -> (i32, i32, i32) {
    %c0_i32 = arith.constant 0 : i32
    %c0_i32_0 = arith.constant 0 : i32
    %c0_i32_1 = arith.constant 0 : i32
    %c0_i32_2 = arith.constant 0 : i32
    return %c0_i32, %c0_i32_0, %c0_i32_1 : i32, i32, i32
  }
  func.func @transform_3(%arg0: i32, %arg1: i32) -> (i32, i32) {
    %c0_i32 = arith.constant 0 : i32
    %c0_i32_0 = arith.constant 0 : i32
    %c0_i32_1 = arith.constant 0 : i32
    return %c0_i32, %c0_i32_0 : i32, i32
  }
  func.func @transform_4(%arg0: i32, %arg1: i32) -> (i32, i32) {
    %c0_i32 = arith.constant 0 : i32
    %c0_i32_0 = arith.constant 0 : i32
    %c0_i32_1 = arith.constant 0 : i32
    return %c0_i32, %c0_i32_0 : i32, i32
  }
  func.func @transform_5(%arg0: i32, %arg1: i32) -> (i32, i32, i32) {
    %c0_i32 = arith.constant 0 : i32
    %c0_i32_0 = arith.constant 0 : i32
    return %arg0, %c0_i32, %arg1 : i32, i32, i32
  }
  func.func @transform_6(%arg0: i32, %arg1: i32) -> (i32, i32, i32, i32) {
    %c0_i32 = arith.constant 0 : i32
    %c0_i32_0 = arith.constant 0 : i32
    %c0_i32_1 = arith.constant 0 : i32
    return %arg0, %arg1, %c0_i32, %c0_i32_0 : i32, i32, i32, i32
  }
  func.func @transform_7(%arg0: i32, %arg1: i32) -> (i32, i32, i32, i32) {
    %c0_i32 = arith.constant 0 : i32
    %c0_i32_0 = arith.constant 0 : i32
    %c0_i32_1 = arith.constant 0 : i32
    return %arg0, %arg1, %c0_i32, %c0_i32_0 : i32, i32, i32, i32
  }
}

module attributes {stable_mosaic.version = 11 : i64} {
  func.func @_bn_mlp_res_kernel(%arg0: i32, %arg1: i32, %arg2: memref<1x4x256xbf16, #tpu.memory_space<vmem>>, %arg3: memref<1x4x256xf32, #tpu.memory_space<vmem>>, %arg4: memref<4x1xf32, #tpu.memory_space<vmem>>, %arg5: memref<4x1xf32, #tpu.memory_space<vmem>>, %arg6: memref<16x4xbf16, #tpu.memory_space<vmem>>, %arg7: memref<16x1xf32, #tpu.memory_space<vmem>>, %arg8: memref<4x16xbf16, #tpu.memory_space<vmem>>, %arg9: memref<4x1xf32, #tpu.memory_space<vmem>>, %arg10: memref<1x4x256xf32, #tpu.memory_space<vmem>>) attributes {dimension_semantics = [#tpu.dimension_semantics<parallel>, #tpu.dimension_semantics<parallel>], iteration_bounds = array<i64: 2, 1>, scalar_prefetch = 0 : i64, scratch_operands = 0 : i64, tpu.core_type = #tpu.core_type<tc>, window_params = [{transform_indices = @transform_0, window_bounds = array<i64: 1, 4, 256>}, {transform_indices = @transform_1, window_bounds = array<i64: 1, 4, 256>}, {pipeline_mode = #tpu.pipeline_mode<synchronous>, transform_indices = @transform_2, window_bounds = array<i64: 4, 1>}, {pipeline_mode = #tpu.pipeline_mode<synchronous>, transform_indices = @transform_3, window_bounds = array<i64: 4, 1>}, {pipeline_mode = #tpu.pipeline_mode<synchronous>, transform_indices = @transform_4, window_bounds = array<i64: 16, 4>}, {pipeline_mode = #tpu.pipeline_mode<synchronous>, transform_indices = @transform_5, window_bounds = array<i64: 16, 1>}, {pipeline_mode = #tpu.pipeline_mode<synchronous>, transform_indices = @transform_6, window_bounds = array<i64: 4, 16>}, {pipeline_mode = #tpu.pipeline_mode<synchronous>, transform_indices = @transform_7, window_bounds = array<i64: 4, 1>}, {transform_indices = @transform_8, window_bounds = array<i64: 1, 4, 256>}]} {
    %c0 = arith.constant 0 : index
    %c0_0 = arith.constant 0 : index
    %c0_1 = arith.constant 0 : index
    %0 = vector.load %arg2[%c0, %c0_0, %c0_1] : memref<1x4x256xbf16, #tpu.memory_space<vmem>>, vector<1x4x256xbf16>
    %1 = vector.shape_cast %0 : vector<1x4x256xbf16> to vector<4x256xbf16>
    %c0_2 = arith.constant 0 : index
    %c0_3 = arith.constant 0 : index
    %2 = vector.load %arg4[%c0_2, %c0_3] : memref<4x1xf32, #tpu.memory_space<vmem>>, vector<4x1xf32>
    %3 = arith.extf %1 : vector<4x256xbf16> to vector<4x256xf32>
    %4 = vector.broadcast %2 : vector<4x1xf32> to vector<4x256xf32>
    %5 = arith.mulf %3, %4 : vector<4x256xf32>
    %c0_4 = arith.constant 0 : index
    %c0_5 = arith.constant 0 : index
    %6 = vector.load %arg5[%c0_4, %c0_5] : memref<4x1xf32, #tpu.memory_space<vmem>>, vector<4x1xf32>
    %7 = vector.broadcast %6 : vector<4x1xf32> to vector<4x256xf32>
    %8 = arith.addf %5, %7 : vector<4x256xf32>
    %c0_6 = arith.constant 0 : index
    %c0_7 = arith.constant 0 : index
    %9 = vector.load %arg6[%c0_6, %c0_7] : memref<16x4xbf16, #tpu.memory_space<vmem>>, vector<16x4xbf16>
    %10 = arith.truncf %8 : vector<4x256xf32> to vector<4x256xbf16>
    %cst = arith.constant dense<0.000000e+00> : vector<16x256xf32>
    %11 = tpu.matmul %9, %10, %cst {dimension_numbers = #tpu.dot_dimension_numbers<[1], [0], [0], [1], [0, 0, 1, 1], [], []>} : vector<16x4xbf16>, vector<4x256xbf16>, vector<16x256xf32> -> vector<16x256xf32>
    %c0_8 = arith.constant 0 : index
    %c0_9 = arith.constant 0 : index
    %12 = vector.load %arg7[%c0_8, %c0_9] : memref<16x1xf32, #tpu.memory_space<vmem>>, vector<16x1xf32>
    %13 = vector.broadcast %12 : vector<16x1xf32> to vector<16x256xf32>
    %14 = arith.addf %11, %13 : vector<16x256xf32>
    %cst_10 = arith.constant 0.000000e+00 : f32
    %15 = vector.broadcast %cst_10 : f32 to vector<16x256xf32>
    %16 = arith.maximumf %14, %15 : vector<16x256xf32>
    %c0_11 = arith.constant 0 : index
    %c0_12 = arith.constant 0 : index
    %17 = vector.load %arg8[%c0_11, %c0_12] : memref<4x16xbf16, #tpu.memory_space<vmem>>, vector<4x16xbf16>
    %18 = arith.truncf %16 : vector<16x256xf32> to vector<16x256xbf16>
    %cst_13 = arith.constant dense<0.000000e+00> : vector<4x256xf32>
    %19 = tpu.matmul %17, %18, %cst_13 {dimension_numbers = #tpu.dot_dimension_numbers<[1], [0], [0], [1], [0, 0, 1, 1], [], []>} : vector<4x16xbf16>, vector<16x256xbf16>, vector<4x256xf32> -> vector<4x256xf32>
    %c0_14 = arith.constant 0 : index
    %c0_15 = arith.constant 0 : index
    %20 = vector.load %arg9[%c0_14, %c0_15] : memref<4x1xf32, #tpu.memory_space<vmem>>, vector<4x1xf32>
    %21 = vector.broadcast %20 : vector<4x1xf32> to vector<4x256xf32>
    %22 = arith.addf %19, %21 : vector<4x256xf32>
    %c0_16 = arith.constant 0 : index
    %c0_17 = arith.constant 0 : index
    %c0_18 = arith.constant 0 : index
    %23 = vector.load %arg3[%c0_16, %c0_17, %c0_18] : memref<1x4x256xf32, #tpu.memory_space<vmem>>, vector<1x4x256xf32>
    %24 = vector.shape_cast %23 : vector<1x4x256xf32> to vector<4x256xf32>
    %25 = arith.addf %22, %24 : vector<4x256xf32>
    %26 = vector.shape_cast %25 : vector<4x256xf32> to vector<1x4x256xf32>
    %c0_19 = arith.constant 0 : index
    %c0_20 = arith.constant 0 : index
    %c0_21 = arith.constant 0 : index
    %27 = vector.load %arg10[%c0_19, %c0_20, %c0_21] : memref<1x4x256xf32, #tpu.memory_space<vmem>>, vector<1x4x256xf32>
    tpu.vector_store %arg10[%c0_19, %c0_20, %c0_21], %26 {strides = array<i32>} : memref<1x4x256xf32, #tpu.memory_space<vmem>>, vector<1x4x256xf32>,
    return
  }
  func.func @transform_0(%arg0: i32, %arg1: i32) -> (i32, i32, i32) {
    %c0_i32 = arith.constant 0 : i32
    %c0_i32_0 = arith.constant 0 : i32
    return %arg0, %c0_i32, %arg1 : i32, i32, i32
  }
  func.func @transform_1(%arg0: i32, %arg1: i32) -> (i32, i32, i32) {
    %c0_i32 = arith.constant 0 : i32
    %c0_i32_0 = arith.constant 0 : i32
    return %arg0, %c0_i32, %arg1 : i32, i32, i32
  }
  func.func @transform_2(%arg0: i32, %arg1: i32) -> (i32, i32) {
    %c0_i32 = arith.constant 0 : i32
    %c0_i32_0 = arith.constant 0 : i32
    %c0_i32_1 = arith.constant 0 : i32
    return %c0_i32, %c0_i32_0 : i32, i32
  }
  func.func @transform_3(%arg0: i32, %arg1: i32) -> (i32, i32) {
    %c0_i32 = arith.constant 0 : i32
    %c0_i32_0 = arith.constant 0 : i32
    %c0_i32_1 = arith.constant 0 : i32
    return %c0_i32, %c0_i32_0 : i32, i32
  }
  func.func @transform_4(%arg0: i32, %arg1: i32) -> (i32, i32) {
    %c0_i32 = arith.constant 0 : i32
    %c0_i32_0 = arith.constant 0 : i32
    %c0_i32_1 = arith.constant 0 : i32
    return %c0_i32, %c0_i32_0 : i32, i32
  }
  func.func @transform_5(%arg0: i32, %arg1: i32) -> (i32, i32) {
    %c0_i32 = arith.constant 0 : i32
    %c0_i32_0 = arith.constant 0 : i32
    %c0_i32_1 = arith.constant 0 : i32
    return %c0_i32, %c0_i32_0 : i32, i32
  }
  func.func @transform_6(%arg0: i32, %arg1: i32) -> (i32, i32) {
    %c0_i32 = arith.constant 0 : i32
    %c0_i32_0 = arith.constant 0 : i32
    %c0_i32_1 = arith.constant 0 : i32
    return %c0_i32, %c0_i32_0 : i32, i32
  }
  func.func @transform_7(%arg0: i32, %arg1: i32) -> (i32, i32) {
    %c0_i32 = arith.constant 0 : i32
    %c0_i32_0 = arith.constant 0 : i32
    %c0_i32_1 = arith.constant 0 : i32
    return %c0_i32, %c0_i32_0 : i32, i32
  }
  func.func @transform_8(%arg0: i32, %arg1: i32) -> (i32, i32, i32) {
    %c0_i32 = arith.constant 0 : i32
    %c0_i32_0 = arith.constant 0 : i32
    return %arg0, %c0_i32, %arg1 : i32, i32, i32
  }
}

</mosaic_0001>

<llo_original>
// kernel: res_block_forward.3
$region0: #{res_block_forward.3}
  #allocation0 [shape = 'u32[]', space=smem, size = 0x4, offset = 0x4, fixed_abs, tag = 'smem constant byte address 0x4 - core index']
  #allocation1 [shape = 'u32[72,128]{1,0:T(1,128)}', space=vmem, size = 0x9000, scoped, tag = 'internal scratch']
  %s0 = inlined_call_operand.vmem [shape: bf16[2,4,256], index: 0, kind: input, shape index: {}]
  %s1 = inlined_call_operand.vmem [shape: f32[2,4,256], index: 1, kind: input, shape index: {}]
  %s2 = inlined_call_operand.vmem [shape: f32[4,1], index: 2, kind: input, shape index: {}]
  %s3 = inlined_call_operand.vmem [shape: f32[4,1], index: 3, kind: input, shape index: {}]
  %s4 = inlined_call_operand.vmem [shape: bf16[16,4], index: 4, kind: input, shape index: {}]
  %s5 = inlined_call_operand.vmem [shape: f32[16,1], index: 5, kind: input, shape index: {}]
  %s6 = inlined_call_operand.vmem [shape: bf16[4,16], index: 6, kind: input, shape index: {}]
  %s7 = inlined_call_operand.vmem [shape: f32[4,1], index: 7, kind: input, shape index: {}]
  %s8 = inlined_call_operand.vmem [shape: f32[2,4,256], index: 8, kind: output, shape index: {}]
  %s9 = sld [smem:[#allocation0]]
  $region65: #{res_block_forward.3} parent=0
    _
  %s11 = ssub.s32 1, %s9
  %s12 = scalar_select 0, %s11, %s9
  loop: start=0, step=1, limit=4
  $region2: #{res_block_forward.3} parent=0 // loop_pre_header
    _
  $region3: #{res_block_forward.3} parent=0 // loop_header
    %s14 = sphi 0, %s18
    %p15 = scmp.ge.s32.totalorder %s14, 4
    %s21 = sphi 0, %s33
    %s22 = sphi 0, %s29
    %s23 = sphi 0, %s21
    %s24 = sphi 0, %s22
    %s25 = sphi 0, %s23
    %s26 = sphi 0, %s24
    %s38 = sphi 0, %s40
    %s41 = sphi 0, %s38
    %s42 = sphi 0, %s41
    %s58 = sphi 0, %s42
    %s66 = sphi 0, %s68
    %s69 = sphi 0, %s66
    %s70 = sphi 0, %s69
    %s86 = sphi 0, %s70
    %s90 = sphi 0, %s90
    %s92 = sphi 0, %s90
    %s93 = sphi 0, %s92
    %s107 = sphi 0, %s93
    %s111 = sphi 0, %s111
    %s113 = sphi 0, %s111
    %s114 = sphi 0, %s113
    %s128 = sphi 0, %s114
    %s132 = sphi 0, %s132
    %s134 = sphi 0, %s132
    %s135 = sphi 0, %s134
    %s149 = sphi 0, %s135
    %s153 = sphi 0, %s153
    %s155 = sphi 0, %s153
    %s156 = sphi 0, %s155
    %s170 = sphi 0, %s156
    %s174 = sphi 0, %s174
    %s176 = sphi 0, %s174
    %s177 = sphi 0, %s176
    %s191 = sphi 0, %s177
    %s195 = sphi 0, %s195
    %s197 = sphi 0, %s195
    %s198 = sphi 0, %s197
    %s212 = sphi 0, %s198
    %s220 = sphi 0, %s222
    %s223 = sphi 0, %s220
    %s224 = sphi 0, %s223
    %s240 = sphi 0, %s224
  $region4: #{res_block_forward.3} parent=0 // loop_header_branch
    %17 = sbr.rel (%p15) target = $region8
  $region5: #{res_block_forward.3} parent=0 // loop_body
    %s19 = ssub.s32 %s14, 1
    %s20 = ssub.s32 %s14, 2
    %s27 = sadd.s32 1, %s22
    %p28 = scmp.ge.s32.totalorder %s27, 1
    %s29 = scalar_select %p28, 0, %s27
    %s30 = sadd.s32 1, %s21
    %s31 = scalar_select %p28, %s30, %s21
    %p32 = scmp.ge.s32.totalorder %s31, 2
    %s33 = scalar_select %p32, 0, %s31
    %s34 = ssub.s32 %s21, %s33
    %s35 = ssub.s32 %s22, %s29
    %s36 = sor.u32 %s34, %s35
    %p37 = scmp.eq.s32.totalorder %s36, 0
    %s39 = sadd.s32 %s38, 1
    %s40 = scalar_select %p37, %s38, %s39
    %p43 = pneg %p37
    %p44 = scmp.eq.s32.totalorder %s14, 1
    %p45 = por %p43, %p44
    %p46 = scmp.ne.s32.totalorder %s38, %s41
    %p47 = scmp.eq.s32.totalorder %s14, 0
    %p48 = por %p46, %p47
    %p49 = scmp.ne.s32.totalorder %s38, %s41
    %p50 = scmp.eq.s32.totalorder %s19, 1
    %p51 = por %p49, %p50
    %p52 = scmp.ne.s32.totalorder %s41, %s42
    %p53 = scmp.eq.s32.totalorder %s19, 0
    %p54 = por %p52, %p53
    %p55 = scmp.ne.s32.totalorder %s41, %s42
    %p56 = scmp.eq.s32.totalorder %s20, 1
    %p57 = por %p55, %p56
    %p59 = scmp.ne.s32.totalorder %s42, %s58
    %p60 = scmp.eq.s32.totalorder %s20, 0
    %p61 = por %p59, %p60
    %s62 = ssub.s32 %s21, %s33
    %s63 = ssub.s32 %s22, %s29
    %s64 = sor.u32 %s62, %s63
    %p65 = scmp.eq.s32.totalorder %s64, 0
    %s67 = sadd.s32 %s66, 1
    %s68 = scalar_select %p65, %s66, %s67
    %p71 = pneg %p65
    %p72 = scmp.eq.s32.totalorder %s14, 1
    %p73 = por %p71, %p72
    %p74 = scmp.ne.s32.totalorder %s66, %s69
    %p75 = scmp.eq.s32.totalorder %s14, 0
    %p76 = por %p74, %p75
    %p77 = scmp.ne.s32.totalorder %s66, %s69
    %p78 = scmp.eq.s32.totalorder %s19, 1
    %p79 = por %p77, %p78
    %p80 = scmp.ne.s32.totalorder %s69, %s70
    %p81 = scmp.eq.s32.totalorder %s19, 0
    %p82 = por %p80, %p81
    %p83 = scmp.ne.s32.totalorder %s69, %s70
    %p84 = scmp.eq.s32.totalorder %s20, 1
    %p85 = por %p83, %p84
    %p87 = scmp.ne.s32.totalorder %s70, %s86
    %p88 = scmp.eq.s32.totalorder %s20, 0
    %p89 = por %p87, %p88
    %s91 = sadd.s32 %s90, 1
    %p94 = scmp.eq.s32.totalorder %s14, 1
    %p95 = scmp.ne.s32.totalorder %s90, %s92
    %p96 = scmp.eq.s32.totalorder %s14, 0
    %p97 = por %p95, %p96
    %p98 = scmp.ne.s32.totalorder %s90, %s92
    %p99 = scmp.eq.s32.totalorder %s19, 1
    %p100 = por %p98, %p99
    %p101 = scmp.ne.s32.totalorder %s92, %s93
    %p102 = scmp.eq.s32.totalorder %s19, 0
    %p103 = por %p101, %p102
    %p104 = scmp.ne.s32.totalorder %s92, %s93
    %p105 = scmp.eq.s32.totalorder %s20, 1
    %p106 = por %p104, %p105
    %p108 = scmp.ne.s32.totalorder %s93, %s107
    %p109 = scmp.eq.s32.totalorder %s20, 0
    %p110 = por %p108, %p109
    %s112 = sadd.s32 %s111, 1
    %p115 = scmp.eq.s32.totalorder %s14, 1
    %p116 = scmp.ne.s32.totalorder %s111, %s113
    %p117 = scmp.eq.s32.totalorder %s14, 0
    %p118 = por %p116, %p117
    %p119 = scmp.ne.s32.totalorder %s111, %s113
    %p120 = scmp.eq.s32.totalorder %s19, 1
    %p121 = por %p119, %p120
    %p122 = scmp.ne.s32.totalorder %s113, %s114
    %p123 = scmp.eq.s32.totalorder %s19, 0
    %p124 = por %p122, %p123
    %p125 = scmp.ne.s32.totalorder %s113, %s114
    %p126 = scmp.eq.s32.totalorder %s20, 1
    %p127 = por %p125, %p126
    %p129 = scmp.ne.s32.totalorder %s114, %s128
    %p130 = scmp.eq.s32.totalorder %s20, 0
    %p131 = por %p129, %p130
    %s133 = sadd.s32 %s132, 1
    %p136 = scmp.eq.s32.totalorder %s14, 1
    %p137 = scmp.ne.s32.totalorder %s132, %s134
    %p138 = scmp.eq.s32.totalorder %s14, 0
    %p139 = por %p137, %p138
    %p140 = scmp.ne.s32.totalorder %s132, %s134
    %p141 = scmp.eq.s32.totalorder %s19, 1
    %p142 = por %p140, %p141
    %p143 = scmp.ne.s32.totalorder %s134, %s135
    %p144 = scmp.eq.s32.totalorder %s19, 0
    %p145 = por %p143, %p144
    %p146 = scmp.ne.s32.totalorder %s134, %s135
    %p147 = scmp.eq.s32.totalorder %s20, 1
    %p148 = por %p146, %p147
    %p150 = scmp.ne.s32.totalorder %s135, %s149
    %p151 = scmp.eq.s32.totalorder %s20, 0
    %p152 = por %p150, %p151
    %s154 = sadd.s32 %s153, 1
    %p157 = scmp.eq.s32.totalorder %s14, 1
    %p158 = scmp.ne.s32.totalorder %s153, %s155
    %p159 = scmp.eq.s32.totalorder %s14, 0
    %p160 = por %p158, %p159
    %p161 = scmp.ne.s32.totalorder %s153, %s155
    %p162 = scmp.eq.s32.totalorder %s19, 1
    %p163 = por %p161, %p162
    %p164 = scmp.ne.s32.totalorder %s155, %s156
    %p165 = scmp.eq.s32.totalorder %s19, 0
    %p166 = por %p164, %p165
    %p167 = scmp.ne.s32.totalorder %s155, %s156
    %p168 = scmp.eq.s32.totalorder %s20, 1
    %p169 = por %p167, %p168
    %p171 = scmp.ne.s32.totalorder %s156, %s170
    %p172 = scmp.eq.s32.totalorder %s20, 0
    %p173 = por %p171, %p172
    %s175 = sadd.s32 %s174, 1
    %p178 = scmp.eq.s32.totalorder %s14, 1
    %p179 = scmp.ne.s32.totalorder %s174, %s176
    %p180 = scmp.eq.s32.totalorder %s14, 0
    %p181 = por %p179, %p180
    %p182 = scmp.ne.s32.totalorder %s174, %s176
    %p183 = scmp.eq.s32.totalorder %s19, 1
    %p184 = por %p182, %p183
    %p185 = scmp.ne.s32.totalorder %s176, %s177
    %p186 = scmp.eq.s32.totalorder %s19, 0
    %p187 = por %p185, %p186
    %p188 = scmp.ne.s32.totalorder %s176, %s177
    %p189 = scmp.eq.s32.totalorder %s20, 1
    %p190 = por %p188, %p189
    %p192 = scmp.ne.s32.totalorder %s177, %s191
    %p193 = scmp.eq.s32.totalorder %s20, 0
    %p194 = por %p192, %p193
    %s196 = sadd.s32 %s195, 1
    %p199 = scmp.eq.s32.totalorder %s14, 1
    %p200 = scmp.ne.s32.totalorder %s195, %s197
    %p201 = scmp.eq.s32.totalorder %s14, 0
    %p202 = por %p200, %p201
    %p203 = scmp.ne.s32.totalorder %s195, %s197
    %p204 = scmp.eq.s32.totalorder %s19, 1
    %p205 = por %p203, %p204
    %p206 = scmp.ne.s32.totalorder %s197, %s198
    %p207 = scmp.eq.s32.totalorder %s19, 0
    %p208 = por %p206, %p207
    %p209 = scmp.ne.s32.totalorder %s197, %s198
    %p210 = scmp.eq.s32.totalorder %s20, 1
    %p211 = por %p209, %p210
    %p213 = scmp.ne.s32.totalorder %s198, %s212
    %p214 = scmp.eq.s32.totalorder %s20, 0
    %p215 = por %p213, %p214
    %s216 = ssub.s32 %s21, %s33
    %s217 = ssub.s32 %s22, %s29
    %s218 = sor.u32 %s216, %s217
    %p219 = scmp.eq.s32.totalorder %s218, 0
    %s221 = sadd.s32 %s220, 1
    %s222 = scalar_select %p219, %s220, %s221
    %p225 = pneg %p219
    %p226 = scmp.eq.s32.totalorder %s14, 1
    %p227 = por %p225, %p226
    %p228 = scmp.ne.s32.totalorder %s220, %s223
    %p229 = scmp.eq.s32.totalorder %s14, 0
    %p230 = por %p228, %p229
    %p231 = scmp.ne.s32.totalorder %s220, %s223
    %p232 = scmp.eq.s32.totalorder %s19, 1
    %p233 = por %p231, %p232
    %p234 = scmp.ne.s32.totalorder %s223, %s224
    %p235 = scmp.eq.s32.totalorder %s19, 0
    %p236 = por %p234, %p235
    %p237 = scmp.ne.s32.totalorder %s223, %s224
    %p238 = scmp.eq.s32.totalorder %s20, 1
    %p239 = por %p237, %p238
    %p241 = scmp.ne.s32.totalorder %s224, %s240
    %p242 = scmp.eq.s32.totalorder %s20, 0
    %p243 = por %p241, %p242
    %p244 = scmp.le.s32.totalorder 1, %s14
    %p245 = scmp.lt.s32.totalorder %s14, 3
    %p246 = pnand %p244, %p245
    %p247 = pneg %p246
    // Predicated region
    $region9: #{res_block_forward.3} parent=5 // pred_check
      _
    $region10: #{res_block_forward.3} parent=5 // pred_check_branch
      %249 = sbr.rel (%p246) target = $region12
    $region11: #{res_block_forward.3} parent=5 // pred_region
      %s250 = ssub.s32 %s14, 1
      // Predicated region
      $region13: #{res_block_forward.3} parent=11 // pred_check
        %p251 = pneg %p103
      $region14: #{res_block_forward.3} parent=11 // pred_check_branch
        %253 = sbr.rel (%p251) target = $region16
      $region15: #{res_block_forward.3} parent=11 // pred_region
        _
      $region16: #{res_block_forward.3} parent=11 // pred_fallthru
        _
      // Predicated region
      $region17: #{res_block_forward.3} parent=11 // pred_check
        %p254 = pneg %p124
      $region18: #{res_block_forward.3} parent=11 // pred_check_branch
        %256 = sbr.rel (%p254) target = $region20
      $region19: #{res_block_forward.3} parent=11 // pred_region
        _
      $region20: #{res_block_forward.3} parent=11 // pred_fallthru
        _
      // Predicated region
      $region21: #{res_block_forward.3} parent=11 // pred_check
        %p257 = pneg %p145
      $region22: #{res_block_forward.3} parent=11 // pred_check_branch
        %259 = sbr.rel (%p257) target = $region24
      $region23: #{res_block_forward.3} parent=11 // pred_region
        _
      $region24: #{res_block_forward.3} parent=11 // pred_fallthru
        _
      // Predicated region
      $region25: #{res_block_forward.3} parent=11 // pred_check
        %p260 = pneg %p166
      $region26: #{res_block_forward.3} parent=11 // pred_check_branch
        %262 = sbr.rel (%p260) target = $region28
      $region27: #{res_block_forward.3} parent=11 // pred_region
        _
      $region28: #{res_block_forward.3} parent=11 // pred_fallthru
        _
      // Predicated region
      $region29: #{res_block_forward.3} parent=11 // pred_check
        %p263 = pneg %p187
      $region30: #{res_block_forward.3} parent=11 // pred_check_branch
        %265 = sbr.rel (%p263) target = $region32
      $region31: #{res_block_forward.3} parent=11 // pred_region
        _
      $region32: #{res_block_forward.3} parent=11 // pred_fallthru
        _
      // Predicated region
      $region33: #{res_block_forward.3} parent=11 // pred_check
        %p266 = pneg %p208
      $region34: #{res_block_forward.3} parent=11 // pred_check_branch
        %268 = sbr.rel (%p266) target = $region36
      $region35: #{res_block_forward.3} parent=11 // pred_region
        _
      $region36: #{res_block_forward.3} parent=11 // pred_fallthru
        _
    $region12: #{res_block_forward.3} parent=5 // pred_fallthru
      _
    %p269 = scmp.lt.s32.totalorder %s14, 2
    // Predicated region
    $region37: #{res_block_forward.3} parent=5 // pred_check
      %p270 = pneg %p269
    $region38: #{res_block_forward.3} parent=5 // pred_check_branch
      %272 = sbr.rel (%p270) target = $region40
    $region39: #{res_block_forward.3} parent=5 // pred_region
      // Predicated region
      $region41: #{res_block_forward.3} parent=39 // pred_check
        %p273 = pneg %p48
      $region42: #{res_block_forward.3} parent=39 // pred_check_branch
        %275 = sbr.rel (%p273) target = $region44
      $region43: #{res_block_forward.3} parent=39 // pred_region
        %s276 = smul.u32 2, %s22
        %p277 = scmp.lt.s32.totalorder %s21, 1
        %s278 = scalar_select %p277, %s21, 1
        %p279 = scmp.lt.s32.totalorder %s276, 1
        %s280 = scalar_select %p279, %s276, 1
        %s281 = smul.addr %s278, 2
        %s282 = sadd.s32 %s280, %s281
        %s283 = smul.addr %s282, 2
        %s284 = scalar_lea.vmem %s0, %s283
        %s285 = smul.u32 2, %s22
      $region44: #{res_block_forward.3} parent=39 // pred_fallthru
        _
      // Predicated region
      $region45: #{res_block_forward.3} parent=39 // pred_check
        %p286 = pneg %p76
      $region46: #{res_block_forward.3} parent=39 // pred_check_branch
        %288 = sbr.rel (%p286) target = $region48
      $region47: #{res_block_forward.3} parent=39 // pred_region
        %s289 = smul.u32 2, %s22
        %p290 = scmp.lt.s32.totalorder %s21, 1
        %s291 = scalar_select %p290, %s21, 1
        %p292 = scmp.lt.s32.totalorder %s289, 1
        %s293 = scalar_select %p292, %s289, 1
        %s294 = smul.addr %s291, 2
        %s295 = sadd.s32 %s293, %s294
        %s296 = smul.addr %s295, 4
        %s297 = scalar_lea.vmem %s1, %s296
        %s298 = smul.u32 2, %s22
      $region48: #{res_block_forward.3} parent=39 // pred_fallthru
        _
    $region40: #{res_block_forward.3} parent=5 // pred_fallthru
      _
    %p299 = scmp.le.s32.totalorder 1, %s14
    %p300 = scmp.lt.s32.totalorder %s14, 3
    %p301 = pnand %p299, %p300
    %p302 = pneg %p301
    // Predicated region
    $region49: #{res_block_forward.3} parent=5 // pred_check
      _
    $region50: #{res_block_forward.3} parent=5 // pred_check_branch
      %304 = sbr.rel (%p301) target = $region52
    $region51: #{res_block_forward.3} parent=5 // pred_region
      %s305 = ssub.s32 %s14, 1
      %s306 = smul.u32 2, %s24
      %p307 = scmp.lt.s32.totalorder %s23, 1
      %s308 = scalar_select %p307, %s23, 1
      %p309 = scmp.lt.s32.totalorder %s306, 1
      %s310 = scalar_select %p309, %s306, 1
      %s311 = smul.addr %s308, 2
      %s312 = sadd.s32 %s310, %s311
      %s313 = smul.addr %s312, 2
      %s314 = scalar_lea.vmem %s0, %s313
      %p315 = pneg %p54
      %p316 = pneg %p51
      %s317 = smul.u32 2, %s24
      %p318 = scmp.lt.s32.totalorder %s23, 1
      %s319 = scalar_select %p318, %s23, 1
      %p320 = scmp.lt.s32.totalorder %s317, 1
      %s321 = scalar_select %p320, %s317, 1
      %s322 = smul.addr %s319, 2
      %s323 = sadd.s32 %s321, %s322
      %s324 = smul.addr %s323, 4
      %s325 = scalar_lea.vmem %s1, %s324
      %p326 = pneg %p82
      %p327 = pneg %p79
      %p328 = pneg %p103
      %p329 = pneg %p100
      %p330 = pneg %p124
      %p331 = pneg %p121
      %p332 = pneg %p145
      %p333 = pneg %p142
      %p334 = pneg %p166
      %p335 = pneg %p163
      %p336 = pneg %p187
      %p337 = pneg %p184
      %p338 = pneg %p208
      %p339 = pneg %p205
      %p340 = pneg %p236
      %p341 = pneg %p233
      %s342 = smul.u32 2, %s24
      %p343 = scmp.lt.s32.totalorder %s23, 1
      %s344 = scalar_select %p343, %s23, 1
      %p345 = scmp.lt.s32.totalorder %s342, 1
      %s346 = scalar_select %p345, %s342, 1
      %s347 = smul.addr %s344, 2
      %s348 = sadd.s32 %s346, %s347
      %s349 = smul.addr %s348, 4
      %s350 = scalar_lea.vmem %s8, %s349
      %s351 = smul.u32 2, %s24
      %p352 = scmp.lt.s32.totalorder %s23, 1
      %s353 = scalar_select %p352, %s23, 1
      %p354 = scmp.lt.s32.totalorder %s351, 1
      %s355 = scalar_select %p354, %s351, 1
      %s356 = smul.addr %s353, 2
      %s357 = sadd.s32 %s355, %s356
      %s358 = smul.addr %s357, 2
      %s359 = scalar_lea.vmem %s0, %s358
      %s360 = smul.u32 2, %s24
      %s361 = smul.u32 2, %s24
      %p362 = scmp.lt.s32.totalorder %s23, 1
      %s363 = scalar_select %p362, %s23, 1
      %p364 = scmp.lt.s32.totalorder %s361, 1
      %s365 = scalar_select %p364, %s361, 1
      %s366 = smul.addr %s363, 2
      %s367 = sadd.s32 %s365, %s366
      %s368 = smul.addr %s367, 4
      %s369 = scalar_lea.vmem %s1, %s368
      %s370 = smul.u32 2, %s24
      %s371 = smul.u32 2, %s24
      %p372 = scmp.lt.s32.totalorder %s23, 1
      %s373 = scalar_select %p372, %s23, 1
      %p374 = scmp.lt.s32.totalorder %s371, 1
      %s375 = scalar_select %p374, %s371, 1
      %s376 = smul.addr %s373, 2
      %s377 = sadd.s32 %s375, %s376
      %s378 = smul.addr %s377, 4
      %s379 = scalar_lea.vmem %s8, %s378
      %s380 = smul.u32 2, %s24
      %v382 = vld [vmem:[%s359] sm:$0xf]
      %v383 = vld [vmem:[%s2] sm:$0xf]
      %v384 = vunpack.c.l.bf16 %v382
      %386 = vset.pattern.permute.xlu0 0
      %387 = vperm.xlu0 %386, %v383
      %v388 = vpop.permute.xlu0 %387
      %v390 = vunpack.c.l.s4 839922192
      %v391 = vunpack.c.0.s8 %v390
      %v392 = vperm.slane %v388, %v391
      %v394 = vmul.f32 %v384, %v392
      %v395 = vld [vmem:[%s3] sm:$0xf]
      %397 = vset.pattern.permute.xlu0 0
      %398 = vperm.xlu0 %397, %v395
      %v399 = vpop.permute.xlu0 %398
      %v401 = vunpack.c.l.s4 839922192
      %v402 = vunpack.c.0.s8 %v401
      %v403 = vperm.slane %v399, %v402
      %v405 = vadd.f32 %v394, %v403
      %v406 = vld [vmem:[%s4] sm:$0xf]
      %v407 = vld [vmem:[%s4 + $0x4] sm:$0xf]
      %409 = vst [vmem:[#allocation1] ss:$2 sm:$0xff] %v405
      %v410 = vld.sshfl [vmem:[#allocation1] sm:$0xff pattern:$0x75316420]
      %v411 = vld.sshfl [vmem:[#allocation1 + $0x8] sm:$0xff pattern:$0x75316420]
      %v414 = vpack.c.bf16 %v410, %v410
      %v415 = vpack.c.bf16 %v411, %v411
      %v416 = vld [vmem:[%s5] sm:$0xff]
      %v417 = vld [vmem:[%s5 + $0x8] sm:$0xff]
      %419 = vset.pattern.permute.xlu0 0
      %420 = vperm.xlu0 %419, %v416
      %v421 = vpop.permute.xlu0 %420
      %424 = vset.pattern.permute.xlu0 0
      %425 = vperm.xlu0 %424, %v417
      %v426 = vpop.permute.xlu0 %425
      %v430 = vunpack.c.l.b16 %v406
      %v431 = vunpack.c.l.b16 %v407
      %v432 = vpack.c.b16 %v431, %v430
      %vm433 = vcmask 31744
      %v435 = vsel %vm433, %v432, 0
      %vm437 = vcmask 1041408
      %v439 = vsel %vm437, %v414, 0
      %v442 = vsel %vm437, %v415, 0
      %444 = vmatpush.bf16.msra.mxu0 0
      %445 = vmatpush.bf16.msra.mxu0 0
      %446 = vmatpush.bf16.msra.mxu0 0
      %447 = vmatpush.bf16.msra.mxu0 0
      %448 = vmatpush.bf16.msra.mxu0 0
      %449 = vmatpush.bf16.msra.mxu0 0
      %450 = vmatpush.bf16.msra.mxu0 0
      %451 = vmatpush.bf16.msra.mxu0 %v439
      %452 = vmatmul.bf16.gmra.mxu0 %v435
      %v453 = vpop.f32.mrf.mxu0
      %v454 = vadd.f32 %v421, %v453
      %v455 = vpop.f32.mrf.mxu0
      %v456 = vadd.f32 %v426, %v455
      %457 = vdwg.mxu0
      %458 = vmatpush.bf16.msra.mxu0 0
      %459 = vmatpush.bf16.msra.mxu0 0
      %460 = vmatpush.bf16.msra.mxu0 0
      %461 = vmatpush.bf16.msra.mxu0 0
      %462 = vmatpush.bf16.msra.mxu0 0
      %463 = vmatpush.bf16.msra.mxu0 0
      %464 = vmatpush.bf16.msra.mxu0 0
      %465 = vmatpush.bf16.msra.mxu0 %v442
      %466 = vmatmul.bf16.gmra.mxu0 %v435
      %v467 = vpop.f32.mrf.mxu0
      %v468 = vadd.f32 %v421, %v467
      %v469 = vpop.f32.mrf.mxu0
      %v470 = vadd.f32 %v426, %v469
      %471 = vdwg.mxu0
      %v472 = vmax.f32 %v454, 0.0
      %v473 = vmax.f32 %v468, 0.0
      %v474 = vmax.f32 %v456, 0.0
      %v475 = vmax.f32 %v470, 0.0
      %v476 = vld [vmem:[%s6] sm:$0x3]
      %v477 = vpack.c.bf16 %v474, %v472
      %v478 = vpack.c.bf16 %v475, %v473
      %v479 = vld [vmem:[%s7] sm:$0xf]
      %481 = vset.pattern.permute.xlu0 0
      %482 = vperm.xlu0 %481, %v479
      %v483 = vpop.permute.xlu0 %482
      %vm485 = vcmask 130048
      %v487 = vsel %vm485, %v476, 0
      %489 = vmatpush.bf16.msra.mxu0 0
      %490 = vmatpush.bf16.msra.mxu0 0
      %491 = vmatpush.bf16.msra.mxu0 0
      %492 = vmatpush.bf16.msra.mxu0 0
      %493 = vmatpush.bf16.msra.mxu0 0
      %494 = vmatpush.bf16.msra.mxu0 0
      %495 = vmatpush.bf16.msra.mxu0 0
      %496 = vmatpush.bf16.msra.mxu0 %v477
      %497 = vmatmul.bf16.gmra.mxu0 %v487
      %v498 = vpop.f32.mrf.mxu0
      %v499 = vadd.f32 %v483, %v498
      %v500 = vpop.f32.mrf.mxu0
      %501 = vdwg.mxu0
      %502 = vmatpush.bf16.msra.mxu0 0
      %503 = vmatpush.bf16.msra.mxu0 0
      %504 = vmatpush.bf16.msra.mxu0 0
      %505 = vmatpush.bf16.msra.mxu0 0
      %506 = vmatpush.bf16.msra.mxu0 0
      %507 = vmatpush.bf16.msra.mxu0 0
      %508 = vmatpush.bf16.msra.mxu0 0
      %509 = vmatpush.bf16.msra.mxu0 %v478
      %510 = vmatmul.bf16.gmra.mxu0 %v487
      %v511 = vpop.f32.mrf.mxu0
      %v512 = vadd.f32 %v483, %v511
      %v513 = vpop.f32.mrf.mxu0
      %514 = vdwg.mxu0
      %v515 = vld [vmem:[%s369] sm:$0xff]
      %517 = vst [vmem:[#allocation1] ss:$2 sm:$0xff] %v515
      %v518 = vld.sshfl [vmem:[#allocation1] sm:$0xff pattern:$0x75316420]
      %v519 = vld.sshfl [vmem:[#allocation1 + $0x8] sm:$0xff pattern:$0x75316420]
      %v522 = vadd.f32 %v499, %v518
      %v523 = vadd.f32 %v512, %v519
      %v526 = vrot.slane %v523, 4
      %vm527 = vcmask 1043456
      %v528 = vsel %vm527, %v522, %v526
      %530 = vst [vmem:[%s379] sm:$0xff] %v528
      %s531 = smul.u32 2, %s24
      %p532 = scmp.lt.s32.totalorder %s23, 1
      %s533 = scalar_select %p532, %s23, 1
      %p534 = scmp.lt.s32.totalorder %s531, 1
      %s535 = scalar_select %p534, %s531, 1
      %s536 = smul.addr %s533, 2
      %s537 = sadd.s32 %s535, %s536
      %s538 = smul.addr %s537, 4
      %s539 = scalar_lea.vmem %s8, %s538
      // Predicated region
      $region53: #{res_block_forward.3} parent=51 // pred_check
        %p540 = pneg %p233
      $region54: #{res_block_forward.3} parent=51 // pred_check_branch
        %542 = sbr.rel (%p540) target = $region56
      $region55: #{res_block_forward.3} parent=51 // pred_region
        %s543 = smul.u32 2, %s24
      $region56: #{res_block_forward.3} parent=51 // pred_fallthru
        _
    $region52: #{res_block_forward.3} parent=5 // pred_fallthru
      _
    %p544 = scmp.le.s32.totalorder 2, %s14
    // Predicated region
    $region57: #{res_block_forward.3} parent=5 // pred_check
      %p545 = pneg %p544
    $region58: #{res_block_forward.3} parent=5 // pred_check_branch
      %547 = sbr.rel (%p545) target = $region60
    $region59: #{res_block_forward.3} parent=5 // pred_region
      %s548 = ssub.s32 %s14, 2
      // Predicated region
      $region61: #{res_block_forward.3} parent=59 // pred_check
        %p549 = pneg %p239
      $region62: #{res_block_forward.3} parent=59 // pred_check_branch
        %551 = sbr.rel (%p549) target = $region64
      $region63: #{res_block_forward.3} parent=59 // pred_region
        %s552 = smul.u32 2, %s26
        %p553 = scmp.lt.s32.totalorder %s25, 1
        %s554 = scalar_select %p553, %s25, 1
        %p555 = scmp.lt.s32.totalorder %s552, 1
        %s556 = scalar_select %p555, %s552, 1
        %s557 = smul.addr %s554, 2
        %s558 = sadd.s32 %s556, %s557
        %s559 = smul.addr %s558, 4
        %s560 = scalar_lea.vmem %s8, %s559
      $region64: #{res_block_forward.3} parent=59 // pred_fallthru
        _
    $region60: #{res_block_forward.3} parent=5 // pred_fallthru
      _
  $region6: #{res_block_forward.3} parent=0 // loop_footer
    %s18 = sadd.s32 1, %s14
  $region7: #{res_block_forward.3} parent=0 // loop_footer_branch
    %13 = sbr.rel target = $region3
  $region8: #{res_block_forward.3} parent=0 // loop_exit
    _

// kernel: res_block_forward.2
$region0: #{res_block_forward.2}
  #allocation0 [shape = 'u32[]', space=smem, size = 0x4, offset = 0x4, fixed_abs, tag = 'smem constant byte address 0x4 - core index']
  #allocation1 [shape = 'u32[72,128]{1,0:T(1,128)}', space=vmem, size = 0x9000, scoped, tag = 'internal scratch']
  #allocation2 [shape = 'bf16[100,256]{1,0:T(8,128)(2,1)}', space=vmem, size = 0xd000, scoped, tag = 'scratch operand']
  %s0 = inlined_call_operand.vmem [shape: f32[2,4,384], index: 0, kind: input, shape index: {}, may-alias: {0,1}]
  %s1 = inlined_call_operand.vmem [shape: f32[2,4,384], index: 1, kind: input, shape index: {}, may-alias: {0,1}]
  %s2 = inlined_call_operand.vmem [shape: bf16[5,1,256], index: 2, kind: input, shape index: {}]
  %s3 = inlined_call_operand.vmem [shape: bf16[4,100], index: 3, kind: input, shape index: {}]
  %s4 = inlined_call_operand.vmem [shape: f32[4,1], index: 4, kind: input, shape index: {}]
  %s5 = inlined_call_operand.vmem [shape: bf16[2,4,256], index: 5, kind: output, shape index: {0}]
  %s6 = inlined_call_operand.vmem [shape: f32[2,1,4,1], index: 6, kind: output, shape index: {1}]
  %s7 = inlined_call_operand.vmem [shape: f32[2,1,4,1], index: 7, kind: output, shape index: {2}]
  %8 = xla_tuple %s5, %s6, %s7
  %s9 = sld [smem:[#allocation0]]
  $region69: #{res_block_forward.2} parent=0
    _
  %s11 = ssub.s32 1, %s9
  %s12 = scalar_select 0, %s11, %s9
  loop: start=0, step=1, limit=4
  $region2: #{res_block_forward.2} parent=0 // loop_pre_header
    _
  $region3: #{res_block_forward.2} parent=0 // loop_header
    %s14 = sphi 0, %s18
    %p15 = scmp.ge.s32.totalorder %s14, 4
    %s21 = sphi 0, %s33
    %s22 = sphi 0, %s29
    %s23 = sphi 0, %s21
    %s24 = sphi 0, %s22
    %s25 = sphi 0, %s23
    %s26 = sphi 0, %s24
    %s38 = sphi 0, %s40
    %s41 = sphi 0, %s38
    %s42 = sphi 0, %s41
    %s58 = sphi 0, %s42
    %s70 = sphi 0, %s72
    %s73 = sphi 0, %s70
    %s74 = sphi 0, %s73
    %s90 = sphi 0, %s74
    %s94 = sphi 0, %s94
    %s96 = sphi 0, %s94
    %s97 = sphi 0, %s96
    %s111 = sphi 0, %s97
    %s115 = sphi 0, %s115
    %s117 = sphi 0, %s115
    %s118 = sphi 0, %s117
    %s132 = sphi 0, %s118
    %s136 = sphi 0, %s136
    %s138 = sphi 0, %s136
    %s139 = sphi 0, %s138
    %s153 = sphi 0, %s139
    %s161 = sphi 0, %s163
    %s164 = sphi 0, %s161
    %s165 = sphi 0, %s164
    %s181 = sphi 0, %s165
    %s189 = sphi 0, %s191
    %s192 = sphi 0, %s189
    %s193 = sphi 0, %s192
    %s209 = sphi 0, %s193
    %s217 = sphi 0, %s219
    %s220 = sphi 0, %s217
    %s221 = sphi 0, %s220
    %s237 = sphi 0, %s221
  $region4: #{res_block_forward.2} parent=0 // loop_header_branch
    %17 = sbr.rel (%p15) target = $region8
  $region5: #{res_block_forward.2} parent=0 // loop_body
    %s19 = ssub.s32 %s14, 1
    %s20 = ssub.s32 %s14, 2
    %s27 = sadd.s32 1, %s22
    %p28 = scmp.ge.s32.totalorder %s27, 1
    %s29 = scalar_select %p28, 0, %s27
    %s30 = sadd.s32 1, %s21
    %s31 = scalar_select %p28, %s30, %s21
    %p32 = scmp.ge.s32.totalorder %s31, 2
    %s33 = scalar_select %p32, 0, %s31
    %s34 = ssub.s32 %s21, %s33
    %s35 = ssub.s32 %s22, %s29
    %s36 = sor.u32 %s34, %s35
    %p37 = scmp.eq.s32.totalorder %s36, 0
    %s39 = sadd.s32 %s38, 1
    %s40 = scalar_select %p37, %s38, %s39
    %p43 = pneg %p37
    %p44 = scmp.eq.s32.totalorder %s14, 1
    %p45 = por %p43, %p44
    %p46 = scmp.ne.s32.totalorder %s38, %s41
    %p47 = scmp.eq.s32.totalorder %s14, 0
    %p48 = por %p46, %p47
    %p49 = scmp.ne.s32.totalorder %s38, %s41
    %p50 = scmp.eq.s32.totalorder %s19, 1
    %p51 = por %p49, %p50
    %p52 = scmp.ne.s32.totalorder %s41, %s42
    %p53 = scmp.eq.s32.totalorder %s19, 0
    %p54 = por %p52, %p53
    %p55 = scmp.ne.s32.totalorder %s41, %s42
    %p56 = scmp.eq.s32.totalorder %s20, 1
    %p57 = por %p55, %p56
    %p59 = scmp.ne.s32.totalorder %s42, %s58
    %p60 = scmp.eq.s32.totalorder %s20, 0
    %p61 = por %p59, %p60
    %s62 = sadd.s32 %s22, 1
    %s63 = smul.u32 %s62, 2
    %s64 = sadd.s32 %s29, 1
    %s65 = smul.u32 %s64, 2
    %s66 = ssub.s32 %s21, %s33
    %s67 = ssub.s32 %s63, %s65
    %s68 = sor.u32 %s66, %s67
    %p69 = scmp.eq.s32.totalorder %s68, 0
    %s71 = sadd.s32 %s70, 1
    %s72 = scalar_select %p69, %s70, %s71
    %p75 = pneg %p69
    %p76 = scmp.eq.s32.totalorder %s14, 1
    %p77 = por %p75, %p76
    %p78 = scmp.ne.s32.totalorder %s70, %s73
    %p79 = scmp.eq.s32.totalorder %s14, 0
    %p80 = por %p78, %p79
    %p81 = scmp.ne.s32.totalorder %s70, %s73
    %p82 = scmp.eq.s32.totalorder %s19, 1
    %p83 = por %p81, %p82
    %p84 = scmp.ne.s32.totalorder %s73, %s74
    %p85 = scmp.eq.s32.totalorder %s19, 0
    %p86 = por %p84, %p85
    %p87 = scmp.ne.s32.totalorder %s73, %s74
    %p88 = scmp.eq.s32.totalorder %s20, 1
    %p89 = por %p87, %p88
    %p91 = scmp.ne.s32.totalorder %s74, %s90
    %p92 = scmp.eq.s32.totalorder %s20, 0
    %p93 = por %p91, %p92
    %s95 = sadd.s32 %s94, 1
    %p98 = scmp.eq.s32.totalorder %s14, 1
    %p99 = scmp.ne.s32.totalorder %s94, %s96
    %p100 = scmp.eq.s32.totalorder %s14, 0
    %p101 = por %p99, %p100
    %p102 = scmp.ne.s32.totalorder %s94, %s96
    %p103 = scmp.eq.s32.totalorder %s19, 1
    %p104 = por %p102, %p103
    %p105 = scmp.ne.s32.totalorder %s96, %s97
    %p106 = scmp.eq.s32.totalorder %s19, 0
    %p107 = por %p105, %p106
    %p108 = scmp.ne.s32.totalorder %s96, %s97
    %p109 = scmp.eq.s32.totalorder %s20, 1
    %p110 = por %p108, %p109
    %p112 = scmp.ne.s32.totalorder %s97, %s111
    %p113 = scmp.eq.s32.totalorder %s20, 0
    %p114 = por %p112, %p113
    %s116 = sadd.s32 %s115, 1
    %p119 = scmp.eq.s32.totalorder %s14, 1
    %p120 = scmp.ne.s32.totalorder %s115, %s117
    %p121 = scmp.eq.s32.totalorder %s14, 0
    %p122 = por %p120, %p121
    %p123 = scmp.ne.s32.totalorder %s115, %s117
    %p124 = scmp.eq.s32.totalorder %s19, 1
    %p125 = por %p123, %p124
    %p126 = scmp.ne.s32.totalorder %s117, %s118
    %p127 = scmp.eq.s32.totalorder %s19, 0
    %p128 = por %p126, %p127
    %p129 = scmp.ne.s32.totalorder %s117, %s118
    %p130 = scmp.eq.s32.totalorder %s20, 1
    %p131 = por %p129, %p130
    %p133 = scmp.ne.s32.totalorder %s118, %s132
    %p134 = scmp.eq.s32.totalorder %s20, 0
    %p135 = por %p133, %p134
    %s137 = sadd.s32 %s136, 1
    %p140 = scmp.eq.s32.totalorder %s14, 1
    %p141 = scmp.ne.s32.totalorder %s136, %s138
    %p142 = scmp.eq.s32.totalorder %s14, 0
    %p143 = por %p141, %p142
    %p144 = scmp.ne.s32.totalorder %s136, %s138
    %p145 = scmp.eq.s32.totalorder %s19, 1
    %p146 = por %p144, %p145
    %p147 = scmp.ne.s32.totalorder %s138, %s139
    %p148 = scmp.eq.s32.totalorder %s19, 0
    %p149 = por %p147, %p148
    %p150 = scmp.ne.s32.totalorder %s138, %s139
    %p151 = scmp.eq.s32.totalorder %s20, 1
    %p152 = por %p150, %p151
    %p154 = scmp.ne.s32.totalorder %s139, %s153
    %p155 = scmp.eq.s32.totalorder %s20, 0
    %p156 = por %p154, %p155
    %s157 = ssub.s32 %s21, %s33
    %s158 = ssub.s32 %s22, %s29
    %s159 = sor.u32 %s157, %s158
    %p160 = scmp.eq.s32.totalorder %s159, 0
    %s162 = sadd.s32 %s161, 1
    %s163 = scalar_select %p160, %s161, %s162
    %p166 = pneg %p160
    %p167 = scmp.eq.s32.totalorder %s14, 1
    %p168 = por %p166, %p167
    %p169 = scmp.ne.s32.totalorder %s161, %s164
    %p170 = scmp.eq.s32.totalorder %s14, 0
    %p171 = por %p169, %p170
    %p172 = scmp.ne.s32.totalorder %s161, %s164
    %p173 = scmp.eq.s32.totalorder %s19, 1
    %p174 = por %p172, %p173
    %p175 = scmp.ne.s32.totalorder %s164, %s165
    %p176 = scmp.eq.s32.totalorder %s19, 0
    %p177 = por %p175, %p176
    %p178 = scmp.ne.s32.totalorder %s164, %s165
    %p179 = scmp.eq.s32.totalorder %s20, 1
    %p180 = por %p178, %p179
    %p182 = scmp.ne.s32.totalorder %s165, %s181
    %p183 = scmp.eq.s32.totalorder %s20, 0
    %p184 = por %p182, %p183
    %s185 = ssub.s32 %s21, %s33
    %s186 = ssub.s32 %s22, %s29
    %s187 = sor.u32 %s185, %s186
    %p188 = scmp.eq.s32.totalorder %s187, 0
    %s190 = sadd.s32 %s189, 1
    %s191 = scalar_select %p188, %s189, %s190
    %p194 = pneg %p188
    %p195 = scmp.eq.s32.totalorder %s14, 1
    %p196 = por %p194, %p195
    %p197 = scmp.ne.s32.totalorder %s189, %s192
    %p198 = scmp.eq.s32.totalorder %s14, 0
    %p199 = por %p197, %p198
    %p200 = scmp.ne.s32.totalorder %s189, %s192
    %p201 = scmp.eq.s32.totalorder %s19, 1
    %p202 = por %p200, %p201
    %p203 = scmp.ne.s32.totalorder %s192, %s193
    %p204 = scmp.eq.s32.totalorder %s19, 0
    %p205 = por %p203, %p204
    %p206 = scmp.ne.s32.totalorder %s192, %s193
    %p207 = scmp.eq.s32.totalorder %s20, 1
    %p208 = por %p206, %p207
    %p210 = scmp.ne.s32.totalorder %s193, %s209
    %p211 = scmp.eq.s32.totalorder %s20, 0
    %p212 = por %p210, %p211
    %s213 = ssub.s32 %s21, %s33
    %s214 = ssub.s32 %s22, %s29
    %s215 = sor.u32 %s213, %s214
    %p216 = scmp.eq.s32.totalorder %s215, 0
    %s218 = sadd.s32 %s217, 1
    %s219 = scalar_select %p216, %s217, %s218
    %p222 = pneg %p216
    %p223 = scmp.eq.s32.totalorder %s14, 1
    %p224 = por %p222, %p223
    %p225 = scmp.ne.s32.totalorder %s217, %s220
    %p226 = scmp.eq.s32.totalorder %s14, 0
    %p227 = por %p225, %p226
    %p228 = scmp.ne.s32.totalorder %s217, %s220
    %p229 = scmp.eq.s32.totalorder %s19, 1
    %p230 = por %p228, %p229
    %p231 = scmp.ne.s32.totalorder %s220, %s221
    %p232 = scmp.eq.s32.totalorder %s19, 0
    %p233 = por %p231, %p232
    %p234 = scmp.ne.s32.totalorder %s220, %s221
    %p235 = scmp.eq.s32.totalorder %s20, 1
    %p236 = por %p234, %p235
    %p238 = scmp.ne.s32.totalorder %s221, %s237
    %p239 = scmp.eq.s32.totalorder %s20, 0
    %p240 = por %p238, %p239
    %p241 = scmp.le.s32.totalorder 1, %s14
    %p242 = scmp.lt.s32.totalorder %s14, 3
    %p243 = pnand %p241, %p242
    %p244 = pneg %p243
    // Predicated region
    $region9: #{res_block_forward.2} parent=5 // pred_check
      _
    $region10: #{res_block_forward.2} parent=5 // pred_check_branch
      %246 = sbr.rel (%p243) target = $region12
    $region11: #{res_block_forward.2} parent=5 // pred_region
      %s247 = ssub.s32 %s14, 1
      // Predicated region
      $region13: #{res_block_forward.2} parent=11 // pred_check
        %p248 = pneg %p107
      $region14: #{res_block_forward.2} parent=11 // pred_check_branch
        %250 = sbr.rel (%p248) target = $region16
      $region15: #{res_block_forward.2} parent=11 // pred_region
        _
      $region16: #{res_block_forward.2} parent=11 // pred_fallthru
        _
      // Predicated region
      $region17: #{res_block_forward.2} parent=11 // pred_check
        %p251 = pneg %p128
      $region18: #{res_block_forward.2} parent=11 // pred_check_branch
        %253 = sbr.rel (%p251) target = $region20
      $region19: #{res_block_forward.2} parent=11 // pred_region
        _
      $region20: #{res_block_forward.2} parent=11 // pred_fallthru
        _
      // Predicated region
      $region21: #{res_block_forward.2} parent=11 // pred_check
        %p254 = pneg %p149
      $region22: #{res_block_forward.2} parent=11 // pred_check_branch
        %256 = sbr.rel (%p254) target = $region24
      $region23: #{res_block_forward.2} parent=11 // pred_region
        _
      $region24: #{res_block_forward.2} parent=11 // pred_fallthru
        _
    $region12: #{res_block_forward.2} parent=5 // pred_fallthru
      _
    %p257 = scmp.lt.s32.totalorder %s14, 2
    // Predicated region
    $region25: #{res_block_forward.2} parent=5 // pred_check
      %p258 = pneg %p257
    $region26: #{res_block_forward.2} parent=5 // pred_check_branch
      %260 = sbr.rel (%p258) target = $region28
    $region27: #{res_block_forward.2} parent=5 // pred_region
      // Predicated region
      $region29: #{res_block_forward.2} parent=27 // pred_check
        %p261 = pneg %p48
      $region30: #{res_block_forward.2} parent=27 // pred_check_branch
        %263 = sbr.rel (%p261) target = $region32
      $region31: #{res_block_forward.2} parent=27 // pred_region
        %s264 = smul.u32 2, %s22
        %s265 = ssub.s32 3, %s264
        %p266 = scmp.lt.s32.totalorder %s265, 2
        %s267 = scalar_select %p266, %s265, 2
        %s268 = smul.u32 4, %s267
        %p269 = scmp.lt.s32.totalorder %s21, 1
        %s270 = scalar_select %p269, %s21, 1
        %p271 = scmp.lt.s32.totalorder %s264, 2
        %s272 = scalar_select %p271, %s264, 2
        %s273 = smul.addr %s270, 3
        %s274 = sadd.s32 %s272, %s273
        %s275 = smul.addr %s274, 4
        %s276 = scalar_lea.vmem %s0, %s275
        %s277 = smul.u32 2, %s22
        %s278 = ssub.s32 3, %s277
        %p279 = scmp.lt.s32.totalorder %s278, 2
        %s280 = scalar_select %p279, %s278, 2
        %s281 = smul.u32 4, %s280
      $region32: #{res_block_forward.2} parent=27 // pred_fallthru
        _
      // Predicated region
      $region33: #{res_block_forward.2} parent=27 // pred_check
        %p282 = pneg %p80
      $region34: #{res_block_forward.2} parent=27 // pred_check_branch
        %284 = sbr.rel (%p282) target = $region36
      $region35: #{res_block_forward.2} parent=27 // pred_region
        %s285 = sadd.s32 %s22, 1
        %s286 = smul.u32 %s285, 2
        %p287 = scmp.lt.s32.totalorder %s21, 1
        %s288 = scalar_select %p287, %s21, 1
        %p289 = scmp.lt.s32.totalorder %s286, 2
        %s290 = scalar_select %p289, %s286, 2
        %s291 = smul.addr %s288, 3
        %s292 = sadd.s32 %s290, %s291
        %s293 = smul.addr %s292, 4
        %s294 = scalar_lea.vmem %s1, %s293
        %s295 = sadd.s32 %s22, 1
        %s296 = smul.u32 %s295, 2
      $region36: #{res_block_forward.2} parent=27 // pred_fallthru
        _
    $region28: #{res_block_forward.2} parent=5 // pred_fallthru
      _
    %p297 = scmp.le.s32.totalorder 1, %s14
    %p298 = scmp.lt.s32.totalorder %s14, 3
    %p299 = pnand %p297, %p298
    %p300 = pneg %p299
    // Predicated region
    $region37: #{res_block_forward.2} parent=5 // pred_check
      _
    $region38: #{res_block_forward.2} parent=5 // pred_check_branch
      %302 = sbr.rel (%p299) target = $region40
    $region39: #{res_block_forward.2} parent=5 // pred_region
      %s303 = ssub.s32 %s14, 1
      %s304 = smul.u32 2, %s24
      %s305 = ssub.s32 3, %s304
      %p306 = scmp.lt.s32.totalorder %s305, 2
      %s307 = scalar_select %p306, %s305, 2
      %s308 = smul.u32 4, %s307
      %p309 = scmp.lt.s32.totalorder %s23, 1
      %s310 = scalar_select %p309, %s23, 1
      %p311 = scmp.lt.s32.totalorder %s304, 2
      %s312 = scalar_select %p311, %s304, 2
      %s313 = smul.addr %s310, 3
      %s314 = sadd.s32 %s312, %s313
      %s315 = smul.addr %s314, 4
      %s316 = scalar_lea.vmem %s0, %s315
      %p317 = pneg %p54
      %p318 = pneg %p51
      %s319 = sadd.s32 %s24, 1
      %s320 = smul.u32 %s319, 2
      %p321 = scmp.lt.s32.totalorder %s23, 1
      %s322 = scalar_select %p321, %s23, 1
      %p323 = scmp.lt.s32.totalorder %s320, 2
      %s324 = scalar_select %p323, %s320, 2
      %s325 = smul.addr %s322, 3
      %s326 = sadd.s32 %s324, %s325
      %s327 = smul.addr %s326, 4
      %s328 = scalar_lea.vmem %s1, %s327
      %p329 = pneg %p86
      %p330 = pneg %p83
      %p331 = pneg %p107
      %p332 = pneg %p104
      %p333 = pneg %p128
      %p334 = pneg %p125
      %p335 = pneg %p149
      %p336 = pneg %p146
      %p337 = pneg %p177
      %p338 = pneg %p174
      %s339 = smul.u32 2, %s24
      %p340 = scmp.lt.s32.totalorder %s23, 1
      %s341 = scalar_select %p340, %s23, 1
      %p342 = scmp.lt.s32.totalorder %s339, 1
      %s343 = scalar_select %p342, %s339, 1
      %s344 = smul.addr %s341, 2
      %s345 = sadd.s32 %s343, %s344
      %s346 = smul.addr %s345, 2
      %s347 = scalar_lea.vmem %s5, %s346
      %p348 = pneg %p205
      %p349 = pneg %p202
      %p350 = scmp.lt.s32.totalorder %s23, 1
      %s351 = scalar_select %p350, %s23, 1
      %p352 = scmp.lt.s32.totalorder %s24, 0
      %s353 = scalar_select %p352, %s24, 0
      %s354 = sadd.s32 %s353, %s351
      %s355 = smul.addr %s354, 4
      %s356 = scalar_lea.vmem %s6, %s355
      %p357 = pneg %p233
      %p358 = pneg %p230
      %p359 = scmp.lt.s32.totalorder %s23, 1
      %s360 = scalar_select %p359, %s23, 1
      %p361 = scmp.lt.s32.totalorder %s24, 0
      %s362 = scalar_select %p361, %s24, 0
      %s363 = sadd.s32 %s362, %s360
      %s364 = smul.addr %s363, 4
      %s365 = scalar_lea.vmem %s7, %s364
      %s366 = smul.u32 2, %s24
      %s367 = ssub.s32 3, %s366
      %p368 = scmp.lt.s32.totalorder %s367, 2
      %s369 = scalar_select %p368, %s367, 2
      %s370 = smul.u32 4, %s369
      %p371 = scmp.lt.s32.totalorder %s23, 1
      %s372 = scalar_select %p371, %s23, 1
      %p373 = scmp.lt.s32.totalorder %s366, 2
      %s374 = scalar_select %p373, %s366, 2
      %s375 = smul.addr %s372, 3
      %s376 = sadd.s32 %s374, %s375
      %s377 = smul.addr %s376, 4
      %s378 = scalar_lea.vmem %s0, %s377
      %s379 = smul.u32 2, %s24
      %s380 = ssub.s32 3, %s379
      %p381 = scmp.lt.s32.totalorder %s380, 2
      %s382 = scalar_select %p381, %s380, 2
      %s383 = smul.u32 4, %s382
      %s384 = sadd.s32 %s24, 1
      %s385 = smul.u32 %s384, 2
      %p386 = scmp.lt.s32.totalorder %s23, 1
      %s387 = scalar_select %p386, %s23, 1
      %p388 = scmp.lt.s32.totalorder %s385, 2
      %s389 = scalar_select %p388, %s385, 2
      %s390 = smul.addr %s387, 3
      %s391 = sadd.s32 %s389, %s390
      %s392 = smul.addr %s391, 4
      %s393 = scalar_lea.vmem %s1, %s392
      %s394 = sadd.s32 %s24, 1
      %s395 = smul.u32 %s394, 2
      %s396 = smul.u32 2, %s24
      %p397 = scmp.lt.s32.totalorder %s23, 1
      %s398 = scalar_select %p397, %s23, 1
      %p399 = scmp.lt.s32.totalorder %s396, 1
      %s400 = scalar_select %p399, %s396, 1
      %s401 = smul.addr %s398, 2
      %s402 = sadd.s32 %s400, %s401
      %s403 = smul.addr %s402, 2
      %s404 = scalar_lea.vmem %s5, %s403
      %s405 = smul.u32 2, %s24
      %p406 = scmp.lt.s32.totalorder %s23, 1
      %s407 = scalar_select %p406, %s23, 1
      %p408 = scmp.lt.s32.totalorder %s24, 0
      %s409 = scalar_select %p408, %s24, 0
      %s410 = sadd.s32 %s409, %s407
      %s411 = smul.addr %s410, 4
      %s412 = scalar_lea.vmem %s6, %s411
      %p413 = scmp.lt.s32.totalorder %s23, 1
      %s414 = scalar_select %p413, %s23, 1
      %p415 = scmp.lt.s32.totalorder %s24, 0
      %s416 = scalar_select %p415, %s24, 0
      %s417 = sadd.s32 %s416, %s414
      %s418 = smul.addr %s417, 4
      %s419 = scalar_lea.vmem %s7, %s418
      %v421 = vld [vmem:[%s378] sm:$0xff]
      %423 = vst [vmem:[#allocation1] ss:$2 sm:$0xff] %v421
      %v424 = vld.sshfl [vmem:[#allocation1] sm:$0xff pattern:$0x75316420]
      %v425 = vld.sshfl [vmem:[#allocation1 + $0x8] sm:$0xff pattern:$0x75316420]
      %v428 = vpack.c.bf16 %v425, %v424
      %v429 = vld [vmem:[%s393] sm:$0xf]
      %v430 = vpack.c.bf16 %v429, %v429
      %v432 = vunpack.c.l.b16 %v428
      %v433 = vunpack.c.h.b16 %v428
      %v434 = vpack.c.b16 %v432, %v432
      %v435 = vpack.c.b16 %v433, %v433
      %436 = vrot.lane.b32.xlu0 %v434, 2
      %v437 = vpop.permute.xlu0 %436
      %438 = vrot.lane.b32.xlu0 %v435, 2
      %v439 = vpop.permute.xlu0 %438
      %vm440 = vcmask 15360
      %v441 = vsel %vm440, %v437, %v439
      %v444 = vunpack.c.l.b16 %v430
      %v445 = vpack.c.b16 %v444, %v444
      %446 = vrot.lane.b32.xlu0 %v445, 2
      %v447 = vpop.permute.xlu0 %446
      %vm448 = vcmask 15360
      %v451 = vsel %vm448, 0, %v437
      %v455 = vsel %vm448, %v439, %v447
      %v457 = vld [vmem:[%s2] sm:$0x3]
      %459 = vst [vmem:[#allocation1] ss:$9 sm:$0xff] %v457
      %v460 = vld [vmem:[#allocation1] sm:$0xff]
      %v461 = vld [vmem:[#allocation1 + $0x9] sm:$0xff]
      %v462 = vpack.i.b16 %v460, %v460
      %v464 = vperm.slane %v462, 0
      %v465 = vpack.i.b16 %v461, %v461
      %v467 = vperm.slane %v465, 0
      %v468 = vunpack.c.l.bf16 %v451
      %v469 = vunpack.c.l.bf16 %v441
      %v470 = vunpack.c.l.bf16 %v464
      %v471 = vunpack.c.l.bf16 %v467
      %v472 = vmul.f32 %v468, %v470
      %v473 = vmul.f32 %v469, %v471
      %v474 = vpack.c.bf16 %v473, %v472
      %475 = vst [vmem:[#allocation2] sm:$0x33] %v474
      %s476 = scalar_lea.vmem %s2, 2
      %v477 = vld [vmem:[%s476] sm:$0x3]
      %479 = vst [vmem:[#allocation1] ss:$9 sm:$0xff] %v477
      %v480 = vld [vmem:[#allocation1] sm:$0xff]
      %v481 = vld [vmem:[#allocation1 + $0x9] sm:$0xff]
      %v482 = vpack.i.b16 %v480, %v480
      %v484 = vperm.slane %v482, 0
      %v485 = vpack.i.b16 %v481, %v481
      %v487 = vperm.slane %v485, 0
      %v488 = vunpack.c.l.bf16 %v455
      %v489 = vunpack.c.l.bf16 %v484
      %v490 = vunpack.c.l.bf16 %v487
      %493 = vrot.lane.b32.xlu0 %v489, 1
      %v494 = vpop.permute.xlu0 %493
      %495 = vrot.lane.b32.xlu0 %v490, 1
      %v496 = vpop.permute.xlu0 %495
      %vm497 = vcmask 7168
      %v498 = vsel %vm497, %v494, %v496
      %v502 = vmul.f32 %v468, %v494
      %v503 = vmul.f32 %v469, %v498
      %v504 = vmul.f32 %v488, %v496
      %v505 = vpack.c.bf16 %v503, %v502
      %v506 = vpack.c.bf16 %v504, %v504
      %v509 = vrot.slane %v505, 6
      %v510 = vrot.slane %v506, 6
      %511 = vrot.lane.b32.xlu0 %v509, 127
      %v512 = vpop.permute.xlu0 %511
      %513 = vrot.lane.b32.xlu0 %v510, 127
      %v514 = vpop.permute.xlu0 %513
      %v515 = vrot.slane %v512, 4
      %v516 = vrot.slane %v514, 4
      %vm517 = vcmask 1043456
      %v518 = vsel %vm517, %v515, %v516
      %vm519 = vcmask 1039360
      %v520 = vsel %vm519, %v512, %v518
      %522 = vst [vmem:[#allocation2] sm:$0xcc] %v520
      %v525 = vunpack.c.l.b16 %v451
      %v526 = vunpack.c.l.b16 %v441
      %v527 = vunpack.c.l.b16 %v455
      %v528 = vpack.c.b16 %v526, %v525
      %v529 = vpack.c.b16 %v527, %v527
      %530 = vrot.lane.b32.xlu0 %v528, 126
      %v531 = vpop.permute.xlu0 %530
      %532 = vrot.lane.b32.xlu0 %v529, 126
      %v533 = vpop.permute.xlu0 %532
      %v534 = vrot.slane %v531, 4
      %v535 = vrot.slane %v533, 4
      %v536 = vsel %vm517, %v534, %v535
      %vm537 = vcmask 1031168
      %v538 = vsel %vm537, %v531, %v536
      %540 = vst [vmem:[#allocation2 + $0x8] sm:$0x33] %v538
      %s541 = scalar_lea.vmem %s2, 6
      %v542 = vld [vmem:[%s541] sm:$0x3]
      %544 = vst [vmem:[#allocation1] ss:$9 sm:$0xff] %v542
      %v545 = vld [vmem:[#allocation1] sm:$0xff]
      %v546 = vld [vmem:[#allocation1 + $0x9] sm:$0xff]
      %v547 = vpack.i.b16 %v545, %v545
      %v549 = vperm.slane %v547, 0
      %v550 = vpack.i.b16 %v546, %v546
      %v552 = vperm.slane %v550, 0
      %v553 = vunpack.c.l.bf16 %v549
      %v554 = vunpack.c.l.bf16 %v552
      %557 = vrot.lane.b32.xlu0 %v553, 3
      %v558 = vpop.permute.xlu0 %557
      %559 = vrot.lane.b32.xlu0 %v554, 3
      %v560 = vpop.permute.xlu0 %559
      %vm561 = vcmask 23552
      %v562 = vsel %vm561, %v558, %v560
      %v566 = vmul.f32 %v468, %v558
      %v567 = vmul.f32 %v469, %v562
      %v568 = vmul.f32 %v488, %v560
      %v569 = vpack.c.bf16 %v567, %v566
      %v570 = vpack.c.bf16 %v568, %v568
      %v573 = vrot.slane %v569, 6
      %v574 = vrot.slane %v570, 6
      %575 = vrot.lane.b32.xlu0 %v573, 125
      %v576 = vpop.permute.xlu0 %575
      %577 = vrot.lane.b32.xlu0 %v574, 125
      %v578 = vpop.permute.xlu0 %577
      %v579 = vrot.slane %v576, 4
      %v580 = vrot.slane %v578, 4
      %v581 = vsel %vm517, %v579, %v580
      %vm582 = vcmask 1022976
      %v583 = vsel %vm582, %v576, %v581
      %585 = vst [vmem:[#allocation2 + $0x8] sm:$0xcc] %v583
      %s586 = scalar_lea.vmem %s2, 8
      %v587 = vld [vmem:[%s586] sm:$0x3]
      %589 = vst [vmem:[#allocation1] ss:$9 sm:$0xff] %v587
      %v590 = vld [vmem:[#allocation1] sm:$0xff]
      %v591 = vld [vmem:[#allocation1 + $0x9] sm:$0xff]
      %v592 = vpack.i.b16 %v590, %v590
      %v594 = vperm.slane %v592, 0
      %v595 = vpack.i.b16 %v591, %v591
      %v597 = vperm.slane %v595, 0
      %v598 = vunpack.c.l.bf16 %v594
      %v599 = vunpack.c.l.bf16 %v597
      %602 = vrot.lane.b32.xlu0 %v598, 4
      %v603 = vpop.permute.xlu0 %602
      %604 = vrot.lane.b32.xlu0 %v599, 4
      %v605 = vpop.permute.xlu0 %604
      %vm606 = vcmask 31744
      %v607 = vsel %vm606, %v603, %v605
      %v611 = vmul.f32 %v468, %v603
      %v612 = vmul.f32 %v469, %v607
      %v613 = vmul.f32 %v488, %v605
      %v614 = vpack.c.bf16 %v612, %v611
      %v615 = vpack.c.bf16 %v613, %v613
      %618 = vrot.lane.b32.xlu0 %v614, 124
      %v619 = vpop.permute.xlu0 %618
      %620 = vrot.lane.b32.xlu0 %v615, 124
      %v621 = vpop.permute.xlu0 %620
      %v622 = vrot.slane %v619, 4
      %v623 = vrot.slane %v621, 4
      %v624 = vsel %vm517, %v622, %v623
      %vm625 = vcmask 1014784
      %v626 = vsel %vm625, %v619, %v624
      %628 = vst [vmem:[#allocation2 + $0x10] sm:$0x33] %v626
      %v629 = vld [vmem:[%s2] sm:$0x3]
      %631 = vst [vmem:[#allocation1] ss:$9 sm:$0xff] %v629
      %v632 = vld [vmem:[#allocation1] sm:$0xff]
      %v633 = vld [vmem:[#allocation1 + $0x9] sm:$0xff]
      %v634 = vpack.i.b16 %v632, %v632
      %v636 = vperm.slane %v634, 0
      %v637 = vpack.i.b16 %v633, %v633
      %v639 = vperm.slane %v637, 0
      %v640 = vunpack.c.l.bf16 %v636
      %v641 = vunpack.c.l.bf16 %v639
      %644 = vrot.lane.b32.xlu0 %v640, 16
      %v645 = vpop.permute.xlu0 %644
      %646 = vrot.lane.b32.xlu0 %v641, 16
      %v647 = vpop.permute.xlu0 %646
      %vm648 = vcmask 130048
      %v649 = vsel %vm648, %v645, %v647
      %v653 = vmul.f32 %v468, %v645
      %v654 = vmul.f32 %v469, %v649
      %v655 = vmul.f32 %v488, %v647
      %v656 = vpack.c.bf16 %v654, %v653
      %v657 = vpack.c.bf16 %v655, %v655
      %v660 = vrot.slane %v656, 6
      %v661 = vrot.slane %v657, 6
      %662 = vrot.lane.b32.xlu0 %v660, 112
      %v663 = vpop.permute.xlu0 %662
      %664 = vrot.lane.b32.xlu0 %v661, 112
      %v665 = vpop.permute.xlu0 %664
      %v666 = vrot.slane %v663, 4
      %v667 = vrot.slane %v665, 4
      %v668 = vsel %vm517, %v666, %v667
      %vm669 = vcmask 916480
      %v670 = vsel %vm669, %v663, %v668
      %672 = vst [vmem:[#allocation2 + $0x10] sm:$0xcc] %v670
      %v673 = vld [vmem:[%s476] sm:$0x3]
      %675 = vst [vmem:[#allocation1] ss:$9 sm:$0xff] %v673
      %v676 = vld [vmem:[#allocation1] sm:$0xff]
      %v677 = vld [vmem:[#allocation1 + $0x9] sm:$0xff]
      %v678 = vpack.i.b16 %v676, %v676
      %v680 = vperm.slane %v678, 0
      %v681 = vpack.i.b16 %v677, %v677
      %v683 = vperm.slane %v681, 0
      %v684 = vunpack.c.l.bf16 %v680
      %v685 = vunpack.c.l.bf16 %v683
      %688 = vrot.lane.b32.xlu0 %v684, 17
      %v689 = vpop.permute.xlu0 %688
      %690 = vrot.lane.b32.xlu0 %v685, 17
      %v691 = vpop.permute.xlu0 %690
      %vm692 = vcmask 138240
      %v693 = vsel %vm692, %v689, %v691
      %v697 = vmul.f32 %v468, %v689
      %v698 = vmul.f32 %v469, %v693
      %v699 = vmul.f32 %v488, %v691
      %v700 = vpack.c.bf16 %v698, %v697
      %v701 = vpack.c.bf16 %v699, %v699
      %704 = vrot.lane.b32.xlu0 %v700, 111
      %v705 = vpop.permute.xlu0 %704
      %706 = vrot.lane.b32.xlu0 %v701, 111
      %v707 = vpop.permute.xlu0 %706
      %v708 = vrot.slane %v705, 4
      %v709 = vrot.slane %v707, 4
      %v710 = vsel %vm517, %v708, %v709
      %vm711 = vcmask 908288
      %v712 = vsel %vm711, %v705, %v710
      %714 = vst [vmem:[#allocation2 + $0x18] sm:$0x33] %v712
      %v715 = vrot.slane %v528, 6
      %v716 = vrot.slane %v529, 6
      %717 = vrot.lane.b32.xlu0 %v715, 110
      %v718 = vpop.permute.xlu0 %717
      %719 = vrot.lane.b32.xlu0 %v716, 110
      %v720 = vpop.permute.xlu0 %719
      %v721 = vrot.slane %v718, 4
      %v722 = vrot.slane %v720, 4
      %v723 = vsel %vm517, %v721, %v722
      %vm724 = vcmask 900096
      %v725 = vsel %vm724, %v718, %v723
      %727 = vst [vmem:[#allocation2 + $0x18] sm:$0xcc] %v725
      %v728 = vld [vmem:[%s541] sm:$0x3]
      %730 = vst [vmem:[#allocation1] ss:$9 sm:$0xff] %v728
      %v731 = vld [vmem:[#allocation1] sm:$0xff]
      %v732 = vld [vmem:[#allocation1 + $0x9] sm:$0xff]
      %v733 = vpack.i.b16 %v731, %v731
      %v735 = vperm.slane %v733, 0
      %v736 = vpack.i.b16 %v732, %v732
      %v738 = vperm.slane %v736, 0
      %v739 = vunpack.c.l.bf16 %v735
      %v740 = vunpack.c.l.bf16 %v738
      %743 = vrot.lane.b32.xlu0 %v739, 19
      %v744 = vpop.permute.xlu0 %743
      %745 = vrot.lane.b32.xlu0 %v740, 19
      %v746 = vpop.permute.xlu0 %745
      %vm747 = vcmask 154624
      %v748 = vsel %vm747, %v744, %v746
      %v752 = vmul.f32 %v468, %v744
      %v753 = vmul.f32 %v469, %v748
      %v754 = vmul.f32 %v488, %v746
      %v755 = vpack.c.bf16 %v753, %v752
      %v756 = vpack.c.bf16 %v754, %v754
      %759 = vrot.lane.b32.xlu0 %v755, 109
      %v760 = vpop.permute.xlu0 %759
      %761 = vrot.lane.b32.xlu0 %v756, 109
      %v762 = vpop.permute.xlu0 %761
      %v763 = vrot.slane %v760, 4
      %v764 = vrot.slane %v762, 4
      %v765 = vsel %vm517, %v763, %v764
      %vm766 = vcmask 891904
      %v767 = vsel %vm766, %v760, %v765
      %769 = vst [vmem:[#allocation2 + $0x20] sm:$0x33] %v767
      %v770 = vld [vmem:[%s586] sm:$0x3]
      %772 = vst [vmem:[#allocation1] ss:$9 sm:$0xff] %v770
      %v773 = vld [vmem:[#allocation1] sm:$0xff]
      %v774 = vld [vmem:[#allocation1 + $0x9] sm:$0xff]
      %v775 = vpack.i.b16 %v773, %v773
      %v777 = vperm.slane %v775, 0
      %v778 = vpack.i.b16 %v774, %v774
      %v780 = vperm.slane %v778, 0
      %v781 = vunpack.c.l.bf16 %v777
      %v782 = vunpack.c.l.bf16 %v780
      %785 = vrot.lane.b32.xlu0 %v781, 20
      %v786 = vpop.permute.xlu0 %785
      %787 = vrot.lane.b32.xlu0 %v782, 20
      %v788 = vpop.permute.xlu0 %787
      %vm789 = vcmask 162816
      %v790 = vsel %vm789, %v786, %v788
      %v794 = vmul.f32 %v468, %v786
      %v795 = vmul.f32 %v469, %v790
      %v796 = vmul.f32 %v488, %v788
      %v797 = vpack.c.bf16 %v795, %v794
      %v798 = vpack.c.bf16 %v796, %v796
      %v801 = vrot.slane %v797, 6
      %v802 = vrot.slane %v798, 6
      %803 = vrot.lane.b32.xlu0 %v801, 108
      %v804 = vpop.permute.xlu0 %803
      %805 = vrot.lane.b32.xlu0 %v802, 108
      %v806 = vpop.permute.xlu0 %805
      %v807 = vrot.slane %v804, 4
      %v808 = vrot.slane %v806, 4
      %v809 = vsel %vm517, %v807, %v808
      %vm810 = vcmask 883712
      %v811 = vsel %vm810, %v804, %v809
      %813 = vst [vmem:[#allocation2 + $0x20] sm:$0xcc] %v811
      %v814 = vld [vmem:[%s2] sm:$0x3]
      %816 = vst [vmem:[#allocation1] ss:$9 sm:$0xff] %v814
      %v817 = vld [vmem:[#allocation1] sm:$0xff]
      %v818 = vld [vmem:[#allocation1 + $0x9] sm:$0xff]
      %v819 = vpack.i.b16 %v817, %v817
      %v821 = vperm.slane %v819, 0
      %v822 = vpack.i.b16 %v818, %v818
      %v824 = vperm.slane %v822, 0
      %v825 = vunpack.c.l.bf16 %v821
      %v826 = vunpack.c.l.bf16 %v824
      %829 = vrot.lane.b32.xlu0 %v825, 32
      %v830 = vpop.permute.xlu0 %829
      %831 = vrot.lane.b32.xlu0 %v826, 32
      %v832 = vpop.permute.xlu0 %831
      %vm833 = vcmask 261120
      %v834 = vsel %vm833, %v830, %v832
      %v838 = vmul.f32 %v468, %v830
      %v839 = vmul.f32 %v469, %v834
      %v840 = vmul.f32 %v488, %v832
      %v841 = vpack.c.bf16 %v839, %v838
      %v842 = vpack.c.bf16 %v840, %v840
      %845 = vrot.lane.b32.xlu0 %v841, 96
      %v846 = vpop.permute.xlu0 %845
      %847 = vrot.lane.b32.xlu0 %v842, 96
      %v848 = vpop.permute.xlu0 %847
      %v849 = vrot.slane %v846, 4
      %v850 = vrot.slane %v848, 4
      %v851 = vsel %vm517, %v849, %v850
      %vm852 = vcmask 785408
      %v853 = vsel %vm852, %v846, %v851
      %855 = vst [vmem:[#allocation2 + $0x28] sm:$0x33] %v853
      %v856 = vld [vmem:[%s476] sm:$0x3]
      %858 = vst [vmem:[#allocation1] ss:$9 sm:$0xff] %v856
      %v859 = vld [vmem:[#allocation1] sm:$0xff]
      %v860 = vld [vmem:[#allocation1 + $0x9] sm:$0xff]
      %v861 = vpack.i.b16 %v859, %v859
      %v863 = vperm.slane %v861, 0
      %v864 = vpack.i.b16 %v860, %v860
      %v866 = vperm.slane %v864, 0
      %v867 = vunpack.c.l.bf16 %v863
      %v868 = vunpack.c.l.bf16 %v866
      %871 = vrot.lane.b32.xlu0 %v867, 33
      %v872 = vpop.permute.xlu0 %871
      %873 = vrot.lane.b32.xlu0 %v868, 33
      %v874 = vpop.permute.xlu0 %873
      %vm875 = vcmask 269312
      %v876 = vsel %vm875, %v872, %v874
      %v880 = vmul.f32 %v468, %v872
      %v881 = vmul.f32 %v469, %v876
      %v882 = vmul.f32 %v488, %v874
      %v883 = vpack.c.bf16 %v881, %v880
      %v884 = vpack.c.bf16 %v882, %v882
      %v887 = vrot.slane %v883, 6
      %v888 = vrot.slane %v884, 6
      %889 = vrot.lane.b32.xlu0 %v887, 95
      %v890 = vpop.permute.xlu0 %889
      %891 = vrot.lane.b32.xlu0 %v888, 95
      %v892 = vpop.permute.xlu0 %891
      %v893 = vrot.slane %v890, 4
      %v894 = vrot.slane %v892, 4
      %v895 = vsel %vm517, %v893, %v894
      %vm896 = vcmask 777216
      %v897 = vsel %vm896, %v890, %v895
      %899 = vst [vmem:[#allocation2 + $0x28] sm:$0xcc] %v897
      %900 = vrot.lane.b32.xlu0 %v528, 94
      %v901 = vpop.permute.xlu0 %900
      %902 = vrot.lane.b32.xlu0 %v529, 94
      %v903 = vpop.permute.xlu0 %902
      %v904 = vrot.slane %v901, 4
      %v905 = vrot.slane %v903, 4
      %v906 = vsel %vm517, %v904, %v905
      %vm907 = vcmask 769024
      %v908 = vsel %vm907, %v901, %v906
      %910 = vst [vmem:[#allocation2 + $0x30] sm:$0x33] %v908
      %v911 = vld [vmem:[%s541] sm:$0x3]
      %913 = vst [vmem:[#allocation1] ss:$9 sm:$0xff] %v911
      %v914 = vld [vmem:[#allocation1] sm:$0xff]
      %v915 = vld [vmem:[#allocation1 + $0x9] sm:$0xff]
      %v916 = vpack.i.b16 %v914, %v914
      %v918 = vperm.slane %v916, 0
      %v919 = vpack.i.b16 %v915, %v915
      %v921 = vperm.slane %v919, 0
      %v922 = vunpack.c.l.bf16 %v918
      %v923 = vunpack.c.l.bf16 %v921
      %926 = vrot.lane.b32.xlu0 %v922, 35
      %v927 = vpop.permute.xlu0 %926
      %928 = vrot.lane.b32.xlu0 %v923, 35
      %v929 = vpop.permute.xlu0 %928
      %vm930 = vcmask 285696
      %v931 = vsel %vm930, %v927, %v929
      %v935 = vmul.f32 %v468, %v927
      %v936 = vmul.f32 %v469, %v931
      %v937 = vmul.f32 %v488, %v929
      %v938 = vpack.c.bf16 %v936, %v935
      %v939 = vpack.c.bf16 %v937, %v937
      %v942 = vrot.slane %v938, 6
      %v943 = vrot.slane %v939, 6
      %944 = vrot.lane.b32.xlu0 %v942, 93
      %v945 = vpop.permute.xlu0 %944
      %946 = vrot.lane.b32.xlu0 %v943, 93
      %v947 = vpop.permute.xlu0 %946
      %v948 = vrot.slane %v945, 4
      %v949 = vrot.slane %v947, 4
      %v950 = vsel %vm517, %v948, %v949
      %vm951 = vcmask 760832
      %v952 = vsel %vm951, %v945, %v950
      %954 = vst [vmem:[#allocation2 + $0x30] sm:$0xcc] %v952
      %v955 = vld [vmem:[%s586] sm:$0x3]
      %957 = vst [vmem:[#allocation1] ss:$9 sm:$0xff] %v955
      %v958 = vld [vmem:[#allocation1] sm:$0xff]
      %v959 = vld [vmem:[#allocation1 + $0x9] sm:$0xff]
      %v960 = vpack.i.b16 %v958, %v958
      %v962 = vperm.slane %v960, 0
      %v963 = vpack.i.b16 %v959, %v959
      %v965 = vperm.slane %v963, 0
      %v966 = vunpack.c.l.bf16 %v962
      %v967 = vunpack.c.l.bf16 %v965
      %970 = vrot.lane.b32.xlu0 %v966, 36
      %v971 = vpop.permute.xlu0 %970
      %972 = vrot.lane.b32.xlu0 %v967, 36
      %v973 = vpop.permute.xlu0 %972
      %vm974 = vcmask 293888
      %v975 = vsel %vm974, %v971, %v973
      %v979 = vmul.f32 %v468, %v971
      %v980 = vmul.f32 %v469, %v975
      %v981 = vmul.f32 %v488, %v973
      %v982 = vpack.c.bf16 %v980, %v979
      %v983 = vpack.c.bf16 %v981, %v981
      %986 = vrot.lane.b32.xlu0 %v982, 92
      %v987 = vpop.permute.xlu0 %986
      %988 = vrot.lane.b32.xlu0 %v983, 92
      %v989 = vpop.permute.xlu0 %988
      %v990 = vrot.slane %v987, 4
      %v991 = vrot.slane %v989, 4
      %v992 = vsel %vm517, %v990, %v991
      %vm993 = vcmask 752640
      %v994 = vsel %vm993, %v987, %v992
      %996 = vst [vmem:[#allocation2 + $0x38] sm:$0x33] %v994
      %v997 = vld [vmem:[%s2] sm:$0x3]
      %999 = vst [vmem:[#allocation1] ss:$9 sm:$0xff] %v997
      %v1000 = vld [vmem:[#allocation1] sm:$0xff]
      %v1001 = vld [vmem:[#allocation1 + $0x9] sm:$0xff]
      %v1002 = vpack.i.b16 %v1000, %v1000
      %v1004 = vperm.slane %v1002, 0
      %v1005 = vpack.i.b16 %v1001, %v1001
      %v1007 = vperm.slane %v1005, 0
      %v1008 = vunpack.c.l.bf16 %v1004
      %v1009 = vunpack.c.l.bf16 %v1007
      %1012 = vrot.lane.b32.xlu0 %v1008, 48
      %v1013 = vpop.permute.xlu0 %1012
      %1014 = vrot.lane.b32.xlu0 %v1009, 48
      %v1015 = vpop.permute.xlu0 %1014
      %vm1016 = vcmask 392192
      %v1017 = vsel %vm1016, %v1013, %v1015
      %v1021 = vmul.f32 %v468, %v1013
      %v1022 = vmul.f32 %v469, %v1017
      %v1023 = vmul.f32 %v488, %v1015
      %v1024 = vpack.c.bf16 %v1022, %v1021
      %v1025 = vpack.c.bf16 %v1023, %v1023
      %v1028 = vrot.slane %v1024, 6
      %v1029 = vrot.slane %v1025, 6
      %1030 = vrot.lane.b32.xlu0 %v1028, 80
      %v1031 = vpop.permute.xlu0 %1030
      %1032 = vrot.lane.b32.xlu0 %v1029, 80
      %v1033 = vpop.permute.xlu0 %1032
      %v1034 = vrot.slane %v1031, 4
      %v1035 = vrot.slane %v1033, 4
      %v1036 = vsel %vm517, %v1034, %v1035
      %vm1037 = vcmask 654336
      %v1038 = vsel %vm1037, %v1031, %v1036
      %1040 = vst [vmem:[#allocation2 + $0x38] sm:$0xcc] %v1038
      %v1041 = vld [vmem:[%s476] sm:$0x3]
      %1043 = vst [vmem:[#allocation1] ss:$9 sm:$0xff] %v1041
      %v1044 = vld [vmem:[#allocation1] sm:$0xff]
      %v1045 = vld [vmem:[#allocation1 + $0x9] sm:$0xff]
      %v1046 = vpack.i.b16 %v1044, %v1044
      %v1048 = vperm.slane %v1046, 0
      %v1049 = vpack.i.b16 %v1045, %v1045
      %v1051 = vperm.slane %v1049, 0
      %v1052 = vunpack.c.l.bf16 %v1048
      %v1053 = vunpack.c.l.bf16 %v1051
      %1056 = vrot.lane.b32.xlu0 %v1052, 49
      %v1057 = vpop.permute.xlu0 %1056
      %1058 = vrot.lane.b32.xlu0 %v1053, 49
      %v1059 = vpop.permute.xlu0 %1058
      %vm1060 = vcmask 400384
      %v1061 = vsel %vm1060, %v1057, %v1059
      %v1065 = vmul.f32 %v468, %v1057
      %v1066 = vmul.f32 %v469, %v1061
      %v1067 = vmul.f32 %v488, %v1059
      %v1068 = vpack.c.bf16 %v1066, %v1065
      %v1069 = vpack.c.bf16 %v1067, %v1067
      %1072 = vrot.lane.b32.xlu0 %v1068, 79
      %v1073 = vpop.permute.xlu0 %1072
      %1074 = vrot.lane.b32.xlu0 %v1069, 79
      %v1075 = vpop.permute.xlu0 %1074
      %v1076 = vrot.slane %v1073, 4
      %v1077 = vrot.slane %v1075, 4
      %v1078 = vsel %vm517, %v1076, %v1077
      %vm1079 = vcmask 646144
      %v1080 = vsel %vm1079, %v1073, %v1078
      %1082 = vst [vmem:[#allocation2 + $0x40] sm:$0x33] %v1080
      %1083 = vrot.lane.b32.xlu0 %v715, 78
      %v1084 = vpop.permute.xlu0 %1083
      %1085 = vrot.lane.b32.xlu0 %v716, 78
      %v1086 = vpop.permute.xlu0 %1085
      %v1087 = vrot.slane %v1084, 4
      %v1088 = vrot.slane %v1086, 4
      %v1089 = vsel %vm517, %v1087, %v1088
      %vm1090 = vcmask 637952
      %v1091 = vsel %vm1090, %v1084, %v1089
      %1093 = vst [vmem:[#allocation2 + $0x40] sm:$0xcc] %v1091
      %v1094 = vld [vmem:[%s541] sm:$0x3]
      %1096 = vst [vmem:[#allocation1] ss:$9 sm:$0xff] %v1094
      %v1097 = vld [vmem:[#allocation1] sm:$0xff]
      %v1098 = vld [vmem:[#allocation1 + $0x9] sm:$0xff]
      %v1099 = vpack.i.b16 %v1097, %v1097
      %v1101 = vperm.slane %v1099, 0
      %v1102 = vpack.i.b16 %v1098, %v1098
      %v1104 = vperm.slane %v1102, 0
      %v1105 = vunpack.c.l.bf16 %v1101
      %v1106 = vunpack.c.l.bf16 %v1104
      %1109 = vrot.lane.b32.xlu0 %v1105, 51
      %v1110 = vpop.permute.xlu0 %1109
      %1111 = vrot.lane.b32.xlu0 %v1106, 51
      %v1112 = vpop.permute.xlu0 %1111
      %vm1113 = vcmask 416768
      %v1114 = vsel %vm1113, %v1110, %v1112
      %v1118 = vmul.f32 %v468, %v1110
      %v1119 = vmul.f32 %v469, %v1114
      %v1120 = vmul.f32 %v488, %v1112
      %v1121 = vpack.c.bf16 %v1119, %v1118
      %v1122 = vpack.c.bf16 %v1120, %v1120
      %1125 = vrot.lane.b32.xlu0 %v1121, 77
      %v1126 = vpop.permute.xlu0 %1125
      %1127 = vrot.lane.b32.xlu0 %v1122, 77
      %v1128 = vpop.permute.xlu0 %1127
      %v1129 = vrot.slane %v1126, 4
      %v1130 = vrot.slane %v1128, 4
      %v1131 = vsel %vm517, %v1129, %v1130
      %vm1132 = vcmask 629760
      %v1133 = vsel %vm1132, %v1126, %v1131
      %1135 = vst [vmem:[#allocation2 + $0x48] sm:$0x33] %v1133
      %v1136 = vld [vmem:[%s586] sm:$0x3]
      %1138 = vst [vmem:[#allocation1] ss:$9 sm:$0xff] %v1136
      %v1139 = vld [vmem:[#allocation1] sm:$0xff]
      %v1140 = vld [vmem:[#allocation1 + $0x9] sm:$0xff]
      %v1141 = vpack.i.b16 %v1139, %v1139
      %v1143 = vperm.slane %v1141, 0
      %v1144 = vpack.i.b16 %v1140, %v1140
      %v1146 = vperm.slane %v1144, 0
      %v1147 = vunpack.c.l.bf16 %v1143
      %v1148 = vunpack.c.l.bf16 %v1146
      %1151 = vrot.lane.b32.xlu0 %v1147, 52
      %v1152 = vpop.permute.xlu0 %1151
      %1153 = vrot.lane.b32.xlu0 %v1148, 52
      %v1154 = vpop.permute.xlu0 %1153
      %vm1155 = vcmask 424960
      %v1156 = vsel %vm1155, %v1152, %v1154
      %v1160 = vmul.f32 %v468, %v1152
      %v1161 = vmul.f32 %v469, %v1156
      %v1162 = vmul.f32 %v488, %v1154
      %v1163 = vpack.c.bf16 %v1161, %v1160
      %v1164 = vpack.c.bf16 %v1162, %v1162
      %v1167 = vrot.slane %v1163, 6
      %v1168 = vrot.slane %v1164, 6
      %1169 = vrot.lane.b32.xlu0 %v1167, 76
      %v1170 = vpop.permute.xlu0 %1169
      %1171 = vrot.lane.b32.xlu0 %v1168, 76
      %v1172 = vpop.permute.xlu0 %1171
      %v1173 = vrot.slane %v1170, 4
      %v1174 = vrot.slane %v1172, 4
      %v1175 = vsel %vm517, %v1173, %v1174
      %vm1176 = vcmask 621568
      %v1177 = vsel %vm1176, %v1170, %v1175
      %1179 = vst [vmem:[#allocation2 + $0x48] sm:$0xcc] %v1177
      %v1180 = vld [vmem:[%s2] sm:$0x3]
      %1182 = vst [vmem:[#allocation1] ss:$9 sm:$0xff] %v1180
      %v1183 = vld [vmem:[#allocation1] sm:$0xff]
      %v1184 = vld [vmem:[#allocation1 + $0x9] sm:$0xff]
      %v1185 = vpack.i.b16 %v1183, %v1183
      %v1187 = vperm.slane %v1185, 0
      %v1188 = vpack.i.b16 %v1184, %v1184
      %v1190 = vperm.slane %v1188, 0
      %v1191 = vunpack.c.l.bf16 %v1187
      %v1192 = vunpack.c.l.bf16 %v1190
      %1195 = vrot.lane.b32.xlu0 %v1191, 64
      %v1196 = vpop.permute.xlu0 %1195
      %1197 = vrot.lane.b32.xlu0 %v1192, 64
      %v1198 = vpop.permute.xlu0 %1197
      %vm1199 = vcmask 523264
      %v1200 = vsel %vm1199, %v1196, %v1198
      %v1204 = vmul.f32 %v468, %v1196
      %v1205 = vmul.f32 %v469, %v1200
      %v1206 = vmul.f32 %v488, %v1198
      %v1207 = vpack.c.bf16 %v1205, %v1204
      %v1208 = vpack.c.bf16 %v1206, %v1206
      %1211 = vrot.lane.b32.xlu0 %v1207, 64
      %v1212 = vpop.permute.xlu0 %1211
      %1213 = vrot.lane.b32.xlu0 %v1208, 64
      %v1214 = vpop.permute.xlu0 %1213
      %v1215 = vrot.slane %v1212, 4
      %v1216 = vrot.slane %v1214, 4
      %v1217 = vsel %vm517, %v1215, %v1216
      %vm1218 = vcmask 523264
      %v1219 = vsel %vm1218, %v1212, %v1217
      %1221 = vst [vmem:[#allocation2 + $0x50] sm:$0x33] %v1219
      %v1222 = vld [vmem:[%s476] sm:$0x3]
      %1224 = vst [vmem:[#allocation1] ss:$9 sm:$0xff] %v1222
      %v1225 = vld [vmem:[#allocation1] sm:$0xff]
      %v1226 = vld [vmem:[#allocation1 + $0x9] sm:$0xff]
      %v1227 = vpack.i.b16 %v1225, %v1225
      %v1229 = vperm.slane %v1227, 0
      %v1230 = vpack.i.b16 %v1226, %v1226
      %v1232 = vperm.slane %v1230, 0
      %v1233 = vunpack.c.l.bf16 %v1229
      %v1234 = vunpack.c.l.bf16 %v1232
      %1237 = vrot.lane.b32.xlu0 %v1233, 65
      %v1238 = vpop.permute.xlu0 %1237
      %1239 = vrot.lane.b32.xlu0 %v1234, 65
      %v1240 = vpop.permute.xlu0 %1239
      %vm1241 = vcmask 531456
      %v1242 = vsel %vm1241, %v1238, %v1240
      %v1246 = vmul.f32 %v468, %v1238
      %v1247 = vmul.f32 %v469, %v1242
      %v1248 = vmul.f32 %v488, %v1240
      %v1249 = vpack.c.bf16 %v1247, %v1246
      %v1250 = vpack.c.bf16 %v1248, %v1248
      %v1253 = vrot.slane %v1249, 6
      %v1254 = vrot.slane %v1250, 6
      %1255 = vrot.lane.b32.xlu0 %v1253, 63
      %v1256 = vpop.permute.xlu0 %1255
      %1257 = vrot.lane.b32.xlu0 %v1254, 63
      %v1258 = vpop.permute.xlu0 %1257
      %v1259 = vrot.slane %v1256, 4
      %v1260 = vrot.slane %v1258, 4
      %v1261 = vsel %vm517, %v1259, %v1260
      %vm1262 = vcmask 515072
      %v1263 = vsel %vm1262, %v1256, %v1261
      %1265 = vst [vmem:[#allocation2 + $0x50] sm:$0xcc] %v1263
      %1266 = vrot.lane.b32.xlu0 %v528, 62
      %v1267 = vpop.permute.xlu0 %1266
      %1268 = vrot.lane.b32.xlu0 %v529, 62
      %v1269 = vpop.permute.xlu0 %1268
      %v1270 = vrot.slane %v1267, 4
      %v1271 = vrot.slane %v1269, 4
      %v1272 = vsel %vm517, %v1270, %v1271
      %vm1273 = vcmask 506880
      %v1274 = vsel %vm1273, %v1267, %v1272
      %1276 = vst [vmem:[#allocation2 + $0x58] sm:$0x33] %v1274
      %v1277 = vld [vmem:[%s541] sm:$0x3]
      %1279 = vst [vmem:[#allocation1] ss:$9 sm:$0xff] %v1277
      %v1280 = vld [vmem:[#allocation1] sm:$0xff]
      %v1281 = vld [vmem:[#allocation1 + $0x9] sm:$0xff]
      %v1282 = vpack.i.b16 %v1280, %v1280
      %v1284 = vperm.slane %v1282, 0
      %v1285 = vpack.i.b16 %v1281, %v1281
      %v1287 = vperm.slane %v1285, 0
      %v1288 = vunpack.c.l.bf16 %v1284
      %v1289 = vunpack.c.l.bf16 %v1287
      %1292 = vrot.lane.b32.xlu0 %v1288, 67
      %v1293 = vpop.permute.xlu0 %1292
      %1294 = vrot.lane.b32.xlu0 %v1289, 67
      %v1295 = vpop.permute.xlu0 %1294
      %vm1296 = vcmask 547840
      %v1297 = vsel %vm1296, %v1293, %v1295
      %v1301 = vmul.f32 %v468, %v1293
      %v1302 = vmul.f32 %v469, %v1297
      %v1303 = vmul.f32 %v488, %v1295
      %v1304 = vpack.c.bf16 %v1302, %v1301
      %v1305 = vpack.c.bf16 %v1303, %v1303
      %v1308 = vrot.slane %v1304, 6
      %v1309 = vrot.slane %v1305, 6
      %1310 = vrot.lane.b32.xlu0 %v1308, 61
      %v1311 = vpop.permute.xlu0 %1310
      %1312 = vrot.lane.b32.xlu0 %v1309, 61
      %v1313 = vpop.permute.xlu0 %1312
      %v1314 = vrot.slane %v1311, 4
      %v1315 = vrot.slane %v1313, 4
      %v1316 = vsel %vm517, %v1314, %v1315
      %vm1317 = vcmask 498688
      %v1318 = vsel %vm1317, %v1311, %v1316
      %1320 = vst [vmem:[#allocation2 + $0x58] sm:$0xcc] %v1318
      %v1321 = vld [vmem:[%s586] sm:$0x3]
      %1323 = vst [vmem:[#allocation1] ss:$9 sm:$0xff] %v1321
      %v1324 = vld [vmem:[#allocation1] sm:$0xff]
      %v1325 = vld [vmem:[#allocation1 + $0x9] sm:$0xff]
      %v1326 = vpack.i.b16 %v1324, %v1324
      %v1328 = vperm.slane %v1326, 0
      %v1329 = vpack.i.b16 %v1325, %v1325
      %v1331 = vperm.slane %v1329, 0
      %v1332 = vunpack.c.l.bf16 %v1328
      %v1333 = vunpack.c.l.bf16 %v1331
      %1336 = vrot.lane.b32.xlu0 %v1332, 68
      %v1337 = vpop.permute.xlu0 %1336
      %1338 = vrot.lane.b32.xlu0 %v1333, 68
      %v1339 = vpop.permute.xlu0 %1338
      %vm1340 = vcmask 556032
      %v1341 = vsel %vm1340, %v1337, %v1339
      %v1345 = vmul.f32 %v468, %v1337
      %v1346 = vmul.f32 %v469, %v1341
      %v1347 = vmul.f32 %v488, %v1339
      %v1348 = vpack.c.bf16 %v1346, %v1345
      %v1349 = vpack.c.bf16 %v1347, %v1347
      %1352 = vrot.lane.b32.xlu0 %v1348, 60
      %v1353 = vpop.permute.xlu0 %1352
      %1354 = vrot.lane.b32.xlu0 %v1349, 60
      %v1355 = vpop.permute.xlu0 %1354
      %v1356 = vrot.slane %v1353, 4
      %v1357 = vrot.slane %v1355, 4
      %v1358 = vsel %vm517, %v1356, %v1357
      %vm1359 = vcmask 490496
      %v1360 = vsel %vm1359, %v1353, %v1358
      %1362 = vst [vmem:[#allocation2 + $0x60] sm:$0x33] %v1360
      %v1363 = vld [vmem:[%s3] sm:$0x3]
      %v1364 = vld [vmem:[#allocation2] sm:$0xff]
      %v1365 = vld [vmem:[#allocation2 + $0x8] sm:$0xff]
      %v1366 = vld [vmem:[#allocation2 + $0x10] sm:$0xff]
      %v1367 = vld [vmem:[#allocation2 + $0x18] sm:$0xff]
      %v1368 = vld [vmem:[#allocation2 + $0x20] sm:$0xff]
      %v1369 = vld [vmem:[#allocation2 + $0x28] sm:$0xff]
      %v1370 = vld [vmem:[#allocation2 + $0x30] sm:$0xff]
      %v1371 = vld [vmem:[#allocation2 + $0x38] sm:$0xff]
      %v1372 = vld [vmem:[#allocation2 + $0x40] sm:$0xff]
      %v1373 = vld [vmem:[#allocation2 + $0x48] sm:$0xff]
      %v1374 = vld [vmem:[#allocation2 + $0x50] sm:$0xff]
      %v1375 = vld [vmem:[#allocation2 + $0x58] sm:$0xff]
      %v1376 = vld [vmem:[#allocation2 + $0x60] sm:$0x33]
      %v1377 = vld [vmem:[%s4] sm:$0xf]
      %1379 = vset.pattern.permute.xlu0 0
      %1380 = vperm.xlu0 %1379, %v1377
      %v1381 = vpop.permute.xlu0 %1380
      %v1396 = vunpack.c.l.b16 %v1364
      %v1397 = vunpack.c.h.b16 %v1364
      %v1398 = vunpack.c.l.b16 %v1365
      %v1399 = vunpack.c.h.b16 %v1365
      %v1400 = vunpack.c.l.b16 %v1366
      %v1401 = vunpack.c.h.b16 %v1366
      %v1402 = vunpack.c.l.b16 %v1367
      %v1403 = vunpack.c.h.b16 %v1367
      %v1404 = vunpack.c.l.b16 %v1368
      %v1405 = vunpack.c.h.b16 %v1368
      %v1406 = vunpack.c.l.b16 %v1369
      %v1407 = vunpack.c.h.b16 %v1369
      %v1408 = vunpack.c.l.b16 %v1370
      %v1409 = vunpack.c.h.b16 %v1370
      %v1410 = vunpack.c.l.b16 %v1371
      %v1411 = vunpack.c.h.b16 %v1371
      %v1412 = vunpack.c.l.b16 %v1372
      %v1413 = vunpack.c.h.b16 %v1372
      %v1414 = vunpack.c.l.b16 %v1373
      %v1415 = vunpack.c.h.b16 %v1373
      %v1416 = vunpack.c.l.b16 %v1374
      %v1417 = vunpack.c.h.b16 %v1374
      %v1418 = vunpack.c.l.b16 %v1375
      %v1419 = vunpack.c.h.b16 %v1375
      %v1420 = vunpack.c.l.b16 %v1376
      %v1421 = vunpack.c.h.b16 %v1376
      %v1422 = vpack.c.b16 %v1398, %v1396
      %v1423 = vpack.c.b16 %v1399, %v1397
      %v1424 = vpack.c.b16 %v1402, %v1400
      %v1425 = vpack.c.b16 %v1403, %v1401
      %v1426 = vpack.c.b16 %v1406, %v1404
      %v1427 = vpack.c.b16 %v1407, %v1405
      %v1428 = vpack.c.b16 %v1410, %v1408
      %v1429 = vpack.c.b16 %v1411, %v1409
      %v1430 = vpack.c.b16 %v1414, %v1412
      %v1431 = vpack.c.b16 %v1415, %v1413
      %v1432 = vpack.c.b16 %v1418, %v1416
      %v1433 = vpack.c.b16 %v1419, %v1417
      %v1434 = vpack.c.b16 %v1420, %v1420
      %v1435 = vpack.c.b16 %v1421, %v1421
      %vm1448 = vcmask 818176
      %v1450 = vsel %vm1448, %v1363, 0
      %vm1452 = vcmask 1041408
      %v1454 = vsel %vm1452, %v1434, 0
      %v1457 = vsel %vm1452, %v1435, 0
      %1459 = vmatpush.bf16.msra.mxu0 0
      %1460 = vmatpush.bf16.msra.mxu0 %v1454
      %1461 = vmatpush.bf16.msra.mxu0 %v1432
      %1462 = vmatpush.bf16.msra.mxu0 %v1430
      %1463 = vmatpush.bf16.msra.mxu0 %v1428
      %1464 = vmatpush.bf16.msra.mxu0 %v1426
      %1465 = vmatpush.bf16.msra.mxu0 %v1424
      %1466 = vmatpush.bf16.msra.mxu0 %v1422
      %1467 = vmatmul.bf16.gmra.mxu0 %v1450
      %v1468 = vpop.f32.mrf.mxu0
      %v1469 = vadd.f32 %v1381, %v1468
      %v1470 = vpop.f32.mrf.mxu0
      %1471 = vdwg.mxu0
      %1472 = vmatpush.bf16.msra.mxu0 0
      %1473 = vmatpush.bf16.msra.mxu0 %v1457
      %1474 = vmatpush.bf16.msra.mxu0 %v1433
      %1475 = vmatpush.bf16.msra.mxu0 %v1431
      %1476 = vmatpush.bf16.msra.mxu0 %v1429
      %1477 = vmatpush.bf16.msra.mxu0 %v1427
      %1478 = vmatpush.bf16.msra.mxu0 %v1425
      %1479 = vmatpush.bf16.msra.mxu0 %v1423
      %1480 = vmatmul.bf16.gmra.mxu0 %v1450
      %v1481 = vpop.f32.mrf.mxu0
      %v1482 = vadd.f32 %v1381, %v1481
      %v1483 = vpop.f32.mrf.mxu0
      %1484 = vdwg.mxu0
      %v1485 = vpack.c.bf16 %v1482, %v1469
      %v1487 = vrot.slane %v1485, 2
      %v1490 = vsel %vm1452, %v1485, %v1487
      %1492 = vst [vmem:[%s404] sm:$0xf] %v1490
      %vm1493 = vcmask 1043456
      %v1494 = vsel %vm1493, %v1469, 0.0
      %v1495 = vsel %vm1493, %v1482, 0.0
      %v1496 = vadd.f32 %v1494, %v1495
      %1497 = vadd.xlane.f32.xlu0 %v1496
      %v1498 = vpop.xlane.xlu0 %1497
      %vm1499 = vcmask 3072
      %1500 = vst.msk [vmem:[%s412] sm:$0xf] %vm1499, %v1498
      %v1501 = vmul.f32 %v1469, %v1469
      %v1502 = vmul.f32 %v1482, %v1482
      %v1503 = vsel %vm1493, %v1501, 0.0
      %v1504 = vsel %vm1493, %v1502, 0.0
      %v1505 = vadd.f32 %v1503, %v1504
      %1506 = vadd.xlane.f32.xlu0 %v1505
      %v1507 = vpop.xlane.xlu0 %1506
      %1508 = vst.msk [vmem:[%s419] sm:$0xf] %vm1499, %v1507
      %s1509 = smul.u32 2, %s24
      %p1510 = scmp.lt.s32.totalorder %s23, 1
      %s1511 = scalar_select %p1510, %s23, 1
      %p1512 = scmp.lt.s32.totalorder %s1509, 1
      %s1513 = scalar_select %p1512, %s1509, 1
      %s1514 = smul.addr %s1511, 2
      %s1515 = sadd.s32 %s1513, %s1514
      %s1516 = smul.addr %s1515, 2
      %s1517 = scalar_lea.vmem %s5, %s1516
      %p1518 = scmp.lt.s32.totalorder %s23, 1
      %s1519 = scalar_select %p1518, %s23, 1
      %p1520 = scmp.lt.s32.totalorder %s24, 0
      %s1521 = scalar_select %p1520, %s24, 0
      %s1522 = sadd.s32 %s1521, %s1519
      %s1523 = smul.addr %s1522, 4
      %s1524 = scalar_lea.vmem %s6, %s1523
      %p1525 = scmp.lt.s32.totalorder %s23, 1
      %s1526 = scalar_select %p1525, %s23, 1
      %p1527 = scmp.lt.s32.totalorder %s24, 0
      %s1528 = scalar_select %p1527, %s24, 0
      %s1529 = sadd.s32 %s1528, %s1526
      %s1530 = smul.addr %s1529, 4
      %s1531 = scalar_lea.vmem %s7, %s1530
      // Predicated region
      $region41: #{res_block_forward.2} parent=39 // pred_check
        %p1532 = pneg %p174
      $region42: #{res_block_forward.2} parent=39 // pred_check_branch
        %1534 = sbr.rel (%p1532) target = $region44
      $region43: #{res_block_forward.2} parent=39 // pred_region
        %s1535 = smul.u32 2, %s24
      $region44: #{res_block_forward.2} parent=39 // pred_fallthru
        _
      // Predicated region
      $region45: #{res_block_forward.2} parent=39 // pred_check
        %p1536 = pneg %p202
      $region46: #{res_block_forward.2} parent=39 // pred_check_branch
        %1538 = sbr.rel (%p1536) target = $region48
      $region47: #{res_block_forward.2} parent=39 // pred_region
        _
      $region48: #{res_block_forward.2} parent=39 // pred_fallthru
        _
      // Predicated region
      $region49: #{res_block_forward.2} parent=39 // pred_check
        %p1539 = pneg %p230
      $region50: #{res_block_forward.2} parent=39 // pred_check_branch
        %1541 = sbr.rel (%p1539) target = $region52
      $region51: #{res_block_forward.2} parent=39 // pred_region
        _
      $region52: #{res_block_forward.2} parent=39 // pred_fallthru
        _
    $region40: #{res_block_forward.2} parent=5 // pred_fallthru
      _
    %p1542 = scmp.le.s32.totalorder 2, %s14
    // Predicated region
    $region53: #{res_block_forward.2} parent=5 // pred_check
      %p1543 = pneg %p1542
    $region54: #{res_block_forward.2} parent=5 // pred_check_branch
      %1545 = sbr.rel (%p1543) target = $region56
    $region55: #{res_block_forward.2} parent=5 // pred_region
      %s1546 = ssub.s32 %s14, 2
      // Predicated region
      $region57: #{res_block_forward.2} parent=55 // pred_check
        %p1547 = pneg %p180
      $region58: #{res_block_forward.2} parent=55 // pred_check_branch
        %1549 = sbr.rel (%p1547) target = $region60
      $region59: #{res_block_forward.2} parent=55 // pred_region
        %s1550 = smul.u32 2, %s26
        %p1551 = scmp.lt.s32.totalorder %s25, 1
        %s1552 = scalar_select %p1551, %s25, 1
        %p1553 = scmp.lt.s32.totalorder %s1550, 1
        %s1554 = scalar_select %p1553, %s1550, 1
        %s1555 = smul.addr %s1552, 2
        %s1556 = sadd.s32 %s1554, %s1555
        %s1557 = smul.addr %s1556, 2
        %s1558 = scalar_lea.vmem %s5, %s1557
      $region60: #{res_block_forward.2} parent=55 // pred_fallthru
        _
      // Predicated region
      $region61: #{res_block_forward.2} parent=55 // pred_check
        %p1559 = pneg %p208
      $region62: #{res_block_forward.2} parent=55 // pred_check_branch
        %1561 = sbr.rel (%p1559) target = $region64
      $region63: #{res_block_forward.2} parent=55 // pred_region
        %p1562 = scmp.lt.s32.totalorder %s25, 1
        %s1563 = scalar_select %p1562, %s25, 1
        %p1564 = scmp.lt.s32.totalorder %s26, 0
        %s1565 = scalar_select %p1564, %s26, 0
        %s1566 = sadd.s32 %s1565, %s1563
        %s1567 = smul.addr %s1566, 4
        %s1568 = scalar_lea.vmem %s6, %s1567
      $region64: #{res_block_forward.2} parent=55 // pred_fallthru
        _
      // Predicated region
      $region65: #{res_block_forward.2} parent=55 // pred_check
        %p1569 = pneg %p236
      $region66: #{res_block_forward.2} parent=55 // pred_check_branch
        %1571 = sbr.rel (%p1569) target = $region68
      $region67: #{res_block_forward.2} parent=55 // pred_region
        %p1572 = scmp.lt.s32.totalorder %s25, 1
        %s1573 = scalar_select %p1572, %s25, 1
        %p1574 = scmp.lt.s32.totalorder %s26, 0
        %s1575 = scalar_select %p1574, %s26, 0
        %s1576 = sadd.s32 %s1575, %s1573
        %s1577 = smul.addr %s1576, 4
        %s1578 = scalar_lea.vmem %s7, %s1577
      $region68: #{res_block_forward.2} parent=55 // pred_fallthru
        _
    $region56: #{res_block_forward.2} parent=5 // pred_fallthru
      _
  $region6: #{res_block_forward.2} parent=0 // loop_footer
    %s18 = sadd.s32 1, %s14
  $region7: #{res_block_forward.2} parent=0 // loop_footer_branch
    %13 = sbr.rel target = $region3
  $region8: #{res_block_forward.2} parent=0 // loop_exit
    _

</llo_original>
